<compile_context>
chip_gen: v5e
topology: v5e:2x2
jax: 0.10.0
libtpu: 0.0.40
codegen_flags: <defaults>
</compile_context>

<pallas_src>
import math
import jax
import jax.numpy as jnp
from jax.experimental import pallas as pl
from jax.experimental.pallas import tpu as pltpu


# ----------------------------------------------------------------------------
# Fused Pallas kernel
# ----------------------------------------------------------------------------
def _leaky_relu(h):
    return jnp.where(h >= 0.0, h, 0.1 * h)


def _gcn(y, w, att, sc, sh):
    """GraphConvolution (bias folded into `sh`) + eval-BN affine + LeakyReLU(0.1).

    y: (R_in, F_in); w: (F_in, F_out); att: (R_out, R_in) block-diag over batch;
    sc/sh: (R_out, F_out).  Operands are loaded by the caller at point of use.
    """
    support = jnp.dot(y, w, preferred_element_type=jnp.float32)
    h = jnp.dot(att, support, preferred_element_type=jnp.float32)
    return _leaky_relu(h * sc + sh)


def _vgae_fused_kernel(
    x_ref,
    w1_ref, att1_ref, sc1_ref, sh1_ref,
    bw_ref, batt_ref, bsc_ref, bsh_ref,            # stacked GC_Block params
    wd1_ref, attd1_ref, scd1_ref, shd1_ref,
    wd2_ref, attd2_ref, scd2_ref, shd2_ref,
    wfc_ref, mask_ref, sel_ref, fmu_ref, fga_ref, bmu_ref, bsig_ref,
    noise_ref,
    z_ref, kl_ref,
):
    num_stage = bw_ref.shape[0] // 2
    B = sel_ref.shape[0]

    # gc1 + bn1 + act on the whole stacked batch (B*node_n rows); dropout = id.
    # Refs are indexed inside the call so live ranges stay short (no up-front
    # hoist of every constant into vregs).
    y = _gcn(x_ref[...], w1_ref[...], att1_ref[...], sc1_ref[...], sh1_ref[...])

    # GC_Blocks: gc1 -> bn1 -> act -> gc2 -> bn2 -> act -> + residual
    for s in range(num_stage):
        i1, i2 = 2 * s, 2 * s + 1
        y1 = _gcn(y, bw_ref[i1], batt_ref[i1], bsc_ref[i1], bsh_ref[i1])
        y2 = _gcn(y1, bw_ref[i2], batt_ref[i2], bsc_ref[i2], bsh_ref[i2])
        y = y2 + y

    # hybrid down-sampling GCN layers (block-diag att keeps batch stacked)
    y = _gcn(y, wd1_ref[...], attd1_ref[...], scd1_ref[...], shd1_ref[...])  # (B*24,128)
    y = _gcn(y, wd2_ref[...], attd2_ref[...], scd2_ref[...], shd2_ref[...])  # (B*8, 64)

    # FC heads on the flattened per-sample (8*64,) vector, computed as ONE
    # lane-dense matmul + block-diag mask + tiny 0/1 fold matmuls:
    #   p[b*8+m, n*2nz+c]  = y[b,m,:] . Wcat[n*64:(n+1)*64, c]
    #   mask keeps only m == n; sel sums the 8 node rows of each sample;
    #   fold_mu / fold_ga pick out the mu / gamma column of each node block.
    p = jnp.dot(y, wfc_ref[...], preferred_element_type=jnp.float32)       # (B*8, 8*2nz)
    s_red = jnp.dot(sel_ref[...], p * mask_ref[...],
                    preferred_element_type=jnp.float32)                     # (B, 8*2nz)
    mu = jnp.dot(s_red, fmu_ref[...], preferred_element_type=jnp.float32) + bmu_ref[...]
    ga = jnp.dot(s_red, fga_ref[...], preferred_element_type=jnp.float32) + bsig_ref[...]
    ga = jnp.clip(ga, -5.0, 5.0)

    z_ref[...] = mu + jnp.exp(ga * 0.5) * noise_ref[...]

    # KL mean computed in-kernel -> single (1,1) scalar output.
    kl_terms = jnp.exp(ga) + mu * mu - 1.0 - ga                             # (B, n_z)
    kl_row = jnp.sum(kl_terms, axis=1, keepdims=True)                       # (B, 1)
    kl_ref[...] = (0.5 / B) * jnp.sum(kl_row, axis=0, keepdims=True)        # (1, 1)


# ----------------------------------------------------------------------------
# Host-side parameter fusion (done once)
# ----------------------------------------------------------------------------
def fuse_params(params, batch):
    """Fold/stack the parameter pytree into kernel-ready arrays for batch `batch`."""
    p = params
    B = batch

    def bdiag(att):
        # (out_node, node) -> (B*out_node, B*node) block diagonal
        return jnp.kron(jnp.eye(B, dtype=att.dtype), att)

    def fold_affine(gc_bias, bn_scale, bn_shift):
        # eval-mode BN affine with the GCN bias folded into the shift, tiled over batch
        scale = jnp.tile(bn_scale, (B, 1))
        shift = jnp.tile(gc_bias.reshape(1, -1) * bn_scale + bn_shift, (B, 1))
        return scale, shift

    sc1, sh1 = fold_affine(p["gc1"]["b"], *p["bn1"])

    blocks = p["blocks"]
    assert len(blocks) >= 1, "fused kernel expects num_stage >= 1"
    gcs = [g for blk in blocks for g in (blk["gc1"], blk["gc2"])]
    bns = [bn for blk in blocks for bn in (blk["bn1"], blk["bn2"])]
    bsc, bsh = [], []
    for g, bn in zip(gcs, bns):
        s, t = fold_affine(g["b"], *bn)
        bsc.append(s)
        bsh.append(t)

    scd1, shd1 = fold_affine(p["gcd1"]["b"], *p["bnd1"])
    scd2, shd2 = fold_affine(p["gcd2"]["b"], *p["bnd2"])

    # ---- FC head packing (fc_mu and fc_sigma fused) ----
    wm, bm = p["fc_mu"]["w"], p["fc_mu"]["b"]
    ws, bs = p["fc_sig"]["w"], p["fc_sig"]["b"]
    n_z = wm.shape[1]
    two_nz = 2 * n_z
    n_node_out = p["gcd2"]["att"].shape[0]          # 8
    f_out = p["gcd2"]["w"].shape[1]                 # 64

    wcat = jnp.concatenate([wm, ws], axis=1)                            # (512, 2nz)
    wr = wcat.reshape(n_node_out, f_out, two_nz)                        # (8, 64, 2nz)
    wfc = jnp.transpose(wr, (1, 0, 2)).reshape(f_out, n_node_out * two_nz)  # (64, 8*2nz)

    rows = B * n_node_out
    row_node = jnp.tile(jnp.arange(n_node_out), B)                      # (B*8,)
    col_node = jnp.repeat(jnp.arange(n_node_out), two_nz)               # (8*2nz,)
    fc_mask = (row_node[:, None] == col_node[None, :]).astype(jnp.float32)   # (B*8, 8*2nz)

    sel = (jnp.arange(B)[:, None] ==
           (jnp.arange(rows) // n_node_out)[None, :]).astype(jnp.float32)    # (B, B*8)

    col_in_block = jnp.arange(n_node_out * two_nz) % two_nz
    fold_mu = (col_in_block[:, None] == jnp.arange(n_z)[None, :]).astype(jnp.float32)
    fold_ga = ((col_in_block - n_z)[:, None] == jnp.arange(n_z)[None, :]).astype(jnp.float32)

    return dict(
        w1=p["gc1"]["w"], att1=bdiag(p["gc1"]["att"]), sc1=sc1, sh1=sh1,
        bw=jnp.stack([g["w"] for g in gcs]),
        batt=jnp.stack([bdiag(g["att"]) for g in gcs]),
        bsc=jnp.stack(bsc), bsh=jnp.stack(bsh),
        wd1=p["gcd1"]["w"], attd1=bdiag(p["gcd1"]["att"]), scd1=scd1, shd1=shd1,
        wd2=p["gcd2"]["w"], attd2=bdiag(p["gcd2"]["att"]), scd2=scd2, shd2=shd2,
        wfc=wfc, fc_mask=fc_mask, sel=sel, fold_mu=fold_mu, fold_ga=fold_ga,
        bmu=bm.reshape(1, -1), bsig=bs.reshape(1, -1),
    )


# ----------------------------------------------------------------------------
# Wrapper: one pallas_call for the whole forward pass
# ----------------------------------------------------------------------------
def vgae_encoder_forward(x, fused, noise):
    """Full VGAE_encoder forward in a single fused Pallas kernel."""
    # TODO(synk): dropout is identity (eval mode); BatchNorm is folded as
    # eval-mode affine with default running statistics.
    B, node_n, f_in = x.shape
    n_z = fused["fold_mu"].shape[1]
    x2 = x.reshape(B * node_n, f_in)          # stacked batch (block-diag layout)

    args = (
        x2,
        fused["w1"], fused["att1"], fused["sc1"], fused["sh1"],
        fused["bw"], fused["batt"], fused["bsc"], fused["bsh"],
        fused["wd1"], fused["attd1"], fused["scd1"], fused["shd1"],
        fused["wd2"], fused["attd2"], fused["scd2"], fused["shd2"],
        fused["wfc"], fused["fc_mask"], fused["sel"],
        fused["fold_mu"], fused["fold_ga"], fused["bmu"], fused["bsig"],
        noise,
    )

    vmem_spec = pl.BlockSpec(memory_space=pltpu.MemorySpace.VMEM)
    bytes_accessed = int(sum(math.prod(a.shape) * a.dtype.itemsize for a in args))
    bytes_accessed += (B * n_z + 1) * 4
    cost = pl.CostEstimate(
        flops=8_400_000,                       # ~ total MXU flops at these shapes
        transcendentals=2 * B * n_z,           # exp(ga/2), exp(ga)
        bytes_accessed=bytes_accessed,
    )

    z, kl = pl.pallas_call(
        _vgae_fused_kernel,
        out_shape=(jax.ShapeDtypeStruct((B, n_z), jnp.float32),
                   jax.ShapeDtypeStruct((1, 1), jnp.float32)),
        in_specs=[vmem_spec] * len(args),
        out_specs=(vmem_spec, vmem_spec),
        compiler_params=pltpu.CompilerParams(vmem_limit_bytes=32 * 1024 * 1024),
        cost_estimate=cost,
    )(*args)
    return z, kl[0, 0]


# ----------------------------------------------------------------------------
# Parameter construction (deterministic, mirrors the PyTorch __init__ shapes)
# ----------------------------------------------------------------------------
_BN_EPS = 1e-5


def _uniform(key, shape, stdv):
    return jax.random.uniform(key, shape, jnp.float32, -stdv, stdv)


def _gc_params(key, in_f, out_f, node_in, node_out):
    k1, k2, k3 = jax.random.split(key, 3)
    stdv = 1.0 / math.sqrt(out_f)
    return dict(w=_uniform(k1, (in_f, out_f), stdv),
                att=_uniform(k2, (node_out, node_in), stdv),
                b=_uniform(k3, (out_f,), stdv))


def _bn_params(node, feat):
    # eval-mode BN with default init: scale = 1/sqrt(var+eps), shift = 0,
    # reshaped from flattened (node*feat,) -> (node, feat) (row-major).
    scale = jnp.full((node, feat), 1.0 / math.sqrt(1.0 + _BN_EPS), jnp.float32)
    shift = jnp.zeros((node, feat), jnp.float32)
    return scale, shift


def init_vgae_encoder_params(key, input_feature, hidden_feature, num_stage,
                             node_n, n_z):
    keys = jax.random.split(key, 4 + 2 * num_stage + 2)
    ki = iter(keys)
    params = {}
    params["gc1"] = _gc_params(next(ki), input_feature, hidden_feature, node_n, node_n)
    params["bn1"] = _bn_params(node_n, hidden_feature)

    blocks = []
    for _ in range(num_stage):
        blocks.append({
            "gc1": _gc_params(next(ki), hidden_feature, hidden_feature, node_n, node_n),
            "bn1": _bn_params(node_n, hidden_feature),
            "gc2": _gc_params(next(ki), hidden_feature, hidden_feature, node_n, node_n),
            "bn2": _bn_params(node_n, hidden_feature),
        })
    params["blocks"] = blocks

    # hybrid=True branch (hard-coded sizes in the PyTorch module)
    out_node_1, out_feat_1 = 24, 128
    out_node_2, out_feat_2 = 8, 64
    params["gcd1"] = _gc_params(next(ki), hidden_feature, out_feat_1, node_n, out_node_1)
    params["bnd1"] = _bn_params(out_node_1, out_feat_1)
    params["gcd2"] = _gc_params(next(ki), out_feat_1, out_feat_2, out_node_1, out_node_2)
    params["bnd2"] = _bn_params(out_node_2, out_feat_2)

    d = out_node_2 * out_feat_2  # 512
    stdv = 1.0 / math.sqrt(n_z)
    kmu, ksig = next(ki), next(ki)
    km1, km2 = jax.random.split(kmu)
    ks1, ks2 = jax.random.split(ksig)
    params["fc_mu"] = dict(w=_uniform(km1, (d, n_z), stdv), b=_uniform(km2, (n_z,), stdv))
    params["fc_sig"] = dict(w=_uniform(ks1, (d, n_z), stdv), b=_uniform(ks2, (n_z,), stdv))
    return params


# ----------------------------------------------------------------------------
if __name__ == "__main__":
    B = 2
    input_feature = 16
    hidden_feature = 32
    num_stage = 2
    node_n = 48
    n_z = 16

    key = jax.random.PRNGKey(0)
    k_param, k_x, k_noise = jax.random.split(key, 3)

    params = init_vgae_encoder_params(k_param, input_feature, hidden_feature,
                                      num_stage, node_n, n_z)
    fused = fuse_params(params, B)

    x = jax.random.normal(k_x, (B, node_n, input_feature), jnp.float32)
    # TODO(synk): torch.normal on-device RNG replaced with deterministic
    # jax.random noise supplied as a kernel input.
    noise = jax.random.normal(k_noise, (B, n_z), jnp.float32)

    fwd = jax.jit(vgae_encoder_forward)
    z_latent, KL = fwd(x, fused, noise)
    jax.block_until_ready(z_latent)
    jax.block_until_ready(KL)

    assert z_latent.shape == (B, n_z)
    assert KL.shape == ()
    assert bool(jnp.all(jnp.isfinite(z_latent))) and bool(jnp.isfinite(KL))
    print("KERNEL_OK")
</pallas_src>

<mosaic_0001>
module attributes {stable_mosaic.version = 11 : i64} {
  func.func @_vgae_fused_kernel(%arg0: memref<96x16xf32, #tpu.memory_space<vmem>>, %arg1: memref<16x32xf32, #tpu.memory_space<vmem>>, %arg2: memref<96x96xf32, #tpu.memory_space<vmem>>, %arg3: memref<96x32xf32, #tpu.memory_space<vmem>>, %arg4: memref<96x32xf32, #tpu.memory_space<vmem>>, %arg5: memref<4x32x32xf32, #tpu.memory_space<vmem>>, %arg6: memref<4x96x96xf32, #tpu.memory_space<vmem>>, %arg7: memref<4x96x32xf32, #tpu.memory_space<vmem>>, %arg8: memref<4x96x32xf32, #tpu.memory_space<vmem>>, %arg9: memref<32x128xf32, #tpu.memory_space<vmem>>, %arg10: memref<48x96xf32, #tpu.memory_space<vmem>>, %arg11: memref<48x128xf32, #tpu.memory_space<vmem>>, %arg12: memref<48x128xf32, #tpu.memory_space<vmem>>, %arg13: memref<128x64xf32, #tpu.memory_space<vmem>>, %arg14: memref<16x48xf32, #tpu.memory_space<vmem>>, %arg15: memref<16x64xf32, #tpu.memory_space<vmem>>, %arg16: memref<16x64xf32, #tpu.memory_space<vmem>>, %arg17: memref<64x256xf32, #tpu.memory_space<vmem>>, %arg18: memref<16x256xf32, #tpu.memory_space<vmem>>, %arg19: memref<2x16xf32, #tpu.memory_space<vmem>>, %arg20: memref<256x16xf32, #tpu.memory_space<vmem>>, %arg21: memref<256x16xf32, #tpu.memory_space<vmem>>, %arg22: memref<1x16xf32, #tpu.memory_space<vmem>>, %arg23: memref<1x16xf32, #tpu.memory_space<vmem>>, %arg24: memref<2x16xf32, #tpu.memory_space<vmem>>, %arg25: memref<2x16xf32, #tpu.memory_space<vmem>>, %arg26: memref<1x1xf32, #tpu.memory_space<vmem>>) attributes {dimension_semantics = [], scalar_prefetch = 0 : i64, scratch_operands = 0 : i64, tpu.core_type = #tpu.core_type<tc>} {
    %c0 = arith.constant 0 : index
    %c0_0 = arith.constant 0 : index
    %0 = vector.load %arg0[%c0, %c0_0] : memref<96x16xf32, #tpu.memory_space<vmem>>, vector<96x16xf32>
    %c0_1 = arith.constant 0 : index
    %c0_2 = arith.constant 0 : index
    %1 = vector.load %arg1[%c0_1, %c0_2] : memref<16x32xf32, #tpu.memory_space<vmem>>, vector<16x32xf32>
    %c0_3 = arith.constant 0 : index
    %c0_4 = arith.constant 0 : index
    %2 = vector.load %arg2[%c0_3, %c0_4] : memref<96x96xf32, #tpu.memory_space<vmem>>, vector<96x96xf32>
    %c0_5 = arith.constant 0 : index
    %c0_6 = arith.constant 0 : index
    %3 = vector.load %arg3[%c0_5, %c0_6] : memref<96x32xf32, #tpu.memory_space<vmem>>, vector<96x32xf32>
    %c0_7 = arith.constant 0 : index
    %c0_8 = arith.constant 0 : index
    %4 = vector.load %arg4[%c0_7, %c0_8] : memref<96x32xf32, #tpu.memory_space<vmem>>, vector<96x32xf32>
    %cst = arith.constant dense<0.000000e+00> : vector<96x32xf32>
    %5 = tpu.matmul %0, %1, %cst {dimension_numbers = #tpu.dot_dimension_numbers<[1], [0], [0], [1], [0, 0, 1, 1], [], []>} : vector<96x16xf32>, vector<16x32xf32>, vector<96x32xf32> -> vector<96x32xf32>
    %cst_9 = arith.constant dense<0.000000e+00> : vector<96x32xf32>
    %6 = tpu.matmul %2, %5, %cst_9 {dimension_numbers = #tpu.dot_dimension_numbers<[1], [0], [0], [1], [0, 0, 1, 1], [], []>} : vector<96x96xf32>, vector<96x32xf32>, vector<96x32xf32> -> vector<96x32xf32>
    %7 = arith.mulf %6, %3 : vector<96x32xf32>
    %8 = arith.addf %7, %4 : vector<96x32xf32>
    %cst_10 = arith.constant 0.000000e+00 : f32
    %9 = vector.broadcast %cst_10 : f32 to vector<96x32xf32>
    %10 = arith.cmpf oge, %8, %9 : vector<96x32xf32>
    %cst_11 = arith.constant 1.000000e-01 : f32
    %11 = vector.broadcast %cst_11 : f32 to vector<96x32xf32>
    %12 = arith.mulf %11, %8 : vector<96x32xf32>
    %13 = arith.select %10, %8, %12 : vector<96x32xi1>, vector<96x32xf32>
    %c0_12 = arith.constant 0 : index
    %c0_13 = arith.constant 0 : index
    %c0_14 = arith.constant 0 : index
    %14 = vector.load %arg5[%c0_12, %c0_13, %c0_14] : memref<4x32x32xf32, #tpu.memory_space<vmem>>, vector<1x32x32xf32>
    %15 = vector.shape_cast %14 : vector<1x32x32xf32> to vector<32x32xf32>
    %c0_15 = arith.constant 0 : index
    %c0_16 = arith.constant 0 : index
    %c0_17 = arith.constant 0 : index
    %16 = vector.load %arg6[%c0_15, %c0_16, %c0_17] : memref<4x96x96xf32, #tpu.memory_space<vmem>>, vector<1x96x96xf32>
    %17 = vector.shape_cast %16 : vector<1x96x96xf32> to vector<96x96xf32>
    %c0_18 = arith.constant 0 : index
    %c0_19 = arith.constant 0 : index
    %c0_20 = arith.constant 0 : index
    %18 = vector.load %arg7[%c0_18, %c0_19, %c0_20] : memref<4x96x32xf32, #tpu.memory_space<vmem>>, vector<1x96x32xf32>
    %19 = vector.shape_cast %18 : vector<1x96x32xf32> to vector<96x32xf32>
    %c0_21 = arith.constant 0 : index
    %c0_22 = arith.constant 0 : index
    %c0_23 = arith.constant 0 : index
    %20 = vector.load %arg8[%c0_21, %c0_22, %c0_23] : memref<4x96x32xf32, #tpu.memory_space<vmem>>, vector<1x96x32xf32>
    %21 = vector.shape_cast %20 : vector<1x96x32xf32> to vector<96x32xf32>
    %cst_24 = arith.constant dense<0.000000e+00> : vector<96x32xf32>
    %22 = tpu.matmul %13, %15, %cst_24 {dimension_numbers = #tpu.dot_dimension_numbers<[1], [0], [0], [1], [0, 0, 1, 1], [], []>} : vector<96x32xf32>, vector<32x32xf32>, vector<96x32xf32> -> vector<96x32xf32>
    %cst_25 = arith.constant dense<0.000000e+00> : vector<96x32xf32>
    %23 = tpu.matmul %17, %22, %cst_25 {dimension_numbers = #tpu.dot_dimension_numbers<[1], [0], [0], [1], [0, 0, 1, 1], [], []>} : vector<96x96xf32>, vector<96x32xf32>, vector<96x32xf32> -> vector<96x32xf32>
    %24 = arith.mulf %23, %19 : vector<96x32xf32>
    %25 = arith.addf %24, %21 : vector<96x32xf32>
    %cst_26 = arith.constant 0.000000e+00 : f32
    %26 = vector.broadcast %cst_26 : f32 to vector<96x32xf32>
    %27 = arith.cmpf oge, %25, %26 : vector<96x32xf32>
    %cst_27 = arith.constant 1.000000e-01 : f32
    %28 = vector.broadcast %cst_27 : f32 to vector<96x32xf32>
    %29 = arith.mulf %28, %25 : vector<96x32xf32>
    %30 = arith.select %27, %25, %29 : vector<96x32xi1>, vector<96x32xf32>
    %c1 = arith.constant 1 : index
    %c0_28 = arith.constant 0 : index
    %c0_29 = arith.constant 0 : index
    %31 = vector.load %arg5[%c1, %c0_28, %c0_29] : memref<4x32x32xf32, #tpu.memory_space<vmem>>, vector<1x32x32xf32>
    %32 = vector.shape_cast %31 : vector<1x32x32xf32> to vector<32x32xf32>
    %c1_30 = arith.constant 1 : index
    %c0_31 = arith.constant 0 : index
    %c0_32 = arith.constant 0 : index
    %33 = vector.load %arg6[%c1_30, %c0_31, %c0_32] : memref<4x96x96xf32, #tpu.memory_space<vmem>>, vector<1x96x96xf32>
    %34 = vector.shape_cast %33 : vector<1x96x96xf32> to vector<96x96xf32>
    %c1_33 = arith.constant 1 : index
    %c0_34 = arith.constant 0 : index
    %c0_35 = arith.constant 0 : index
    %35 = vector.load %arg7[%c1_33, %c0_34, %c0_35] : memref<4x96x32xf32, #tpu.memory_space<vmem>>, vector<1x96x32xf32>
    %36 = vector.shape_cast %35 : vector<1x96x32xf32> to vector<96x32xf32>
    %c1_36 = arith.constant 1 : index
    %c0_37 = arith.constant 0 : index
    %c0_38 = arith.constant 0 : index
    %37 = vector.load %arg8[%c1_36, %c0_37, %c0_38] : memref<4x96x32xf32, #tpu.memory_space<vmem>>, vector<1x96x32xf32>
    %38 = vector.shape_cast %37 : vector<1x96x32xf32> to vector<96x32xf32>
    %cst_39 = arith.constant dense<0.000000e+00> : vector<96x32xf32>
    %39 = tpu.matmul %30, %32, %cst_39 {dimension_numbers = #tpu.dot_dimension_numbers<[1], [0], [0], [1], [0, 0, 1, 1], [], []>} : vector<96x32xf32>, vector<32x32xf32>, vector<96x32xf32> -> vector<96x32xf32>
    %cst_40 = arith.constant dense<0.000000e+00> : vector<96x32xf32>
    %40 = tpu.matmul %34, %39, %cst_40 {dimension_numbers = #tpu.dot_dimension_numbers<[1], [0], [0], [1], [0, 0, 1, 1], [], []>} : vector<96x96xf32>, vector<96x32xf32>, vector<96x32xf32> -> vector<96x32xf32>
    %41 = arith.mulf %40, %36 : vector<96x32xf32>
    %42 = arith.addf %41, %38 : vector<96x32xf32>
    %cst_41 = arith.constant 0.000000e+00 : f32
    %43 = vector.broadcast %cst_41 : f32 to vector<96x32xf32>
    %44 = arith.cmpf oge, %42, %43 : vector<96x32xf32>
    %cst_42 = arith.constant 1.000000e-01 : f32
    %45 = vector.broadcast %cst_42 : f32 to vector<96x32xf32>
    %46 = arith.mulf %45, %42 : vector<96x32xf32>
    %47 = arith.select %44, %42, %46 : vector<96x32xi1>, vector<96x32xf32>
    %48 = arith.addf %47, %13 : vector<96x32xf32>
    %c2 = arith.constant 2 : index
    %c0_43 = arith.constant 0 : index
    %c0_44 = arith.constant 0 : index
    %49 = vector.load %arg5[%c2, %c0_43, %c0_44] : memref<4x32x32xf32, #tpu.memory_space<vmem>>, vector<1x32x32xf32>
    %50 = vector.shape_cast %49 : vector<1x32x32xf32> to vector<32x32xf32>
    %c2_45 = arith.constant 2 : index
    %c0_46 = arith.constant 0 : index
    %c0_47 = arith.constant 0 : index
    %51 = vector.load %arg6[%c2_45, %c0_46, %c0_47] : memref<4x96x96xf32, #tpu.memory_space<vmem>>, vector<1x96x96xf32>
    %52 = vector.shape_cast %51 : vector<1x96x96xf32> to vector<96x96xf32>
    %c2_48 = arith.constant 2 : index
    %c0_49 = arith.constant 0 : index
    %c0_50 = arith.constant 0 : index
    %53 = vector.load %arg7[%c2_48, %c0_49, %c0_50] : memref<4x96x32xf32, #tpu.memory_space<vmem>>, vector<1x96x32xf32>
    %54 = vector.shape_cast %53 : vector<1x96x32xf32> to vector<96x32xf32>
    %c2_51 = arith.constant 2 : index
    %c0_52 = arith.constant 0 : index
    %c0_53 = arith.constant 0 : index
    %55 = vector.load %arg8[%c2_51, %c0_52, %c0_53] : memref<4x96x32xf32, #tpu.memory_space<vmem>>, vector<1x96x32xf32>
    %56 = vector.shape_cast %55 : vector<1x96x32xf32> to vector<96x32xf32>
    %cst_54 = arith.constant dense<0.000000e+00> : vector<96x32xf32>
    %57 = tpu.matmul %48, %50, %cst_54 {dimension_numbers = #tpu.dot_dimension_numbers<[1], [0], [0], [1], [0, 0, 1, 1], [], []>} : vector<96x32xf32>, vector<32x32xf32>, vector<96x32xf32> -> vector<96x32xf32>
    %cst_55 = arith.constant dense<0.000000e+00> : vector<96x32xf32>
    %58 = tpu.matmul %52, %57, %cst_55 {dimension_numbers = #tpu.dot_dimension_numbers<[1], [0], [0], [1], [0, 0, 1, 1], [], []>} : vector<96x96xf32>, vector<96x32xf32>, vector<96x32xf32> -> vector<96x32xf32>
    %59 = arith.mulf %58, %54 : vector<96x32xf32>
    %60 = arith.addf %59, %56 : vector<96x32xf32>
    %cst_56 = arith.constant 0.000000e+00 : f32
    %61 = vector.broadcast %cst_56 : f32 to vector<96x32xf32>
    %62 = arith.cmpf oge, %60, %61 : vector<96x32xf32>
    %cst_57 = arith.constant 1.000000e-01 : f32
    %63 = vector.broadcast %cst_57 : f32 to vector<96x32xf32>
    %64 = arith.mulf %63, %60 : vector<96x32xf32>
    %65 = arith.select %62, %60, %64 : vector<96x32xi1>, vector<96x32xf32>
    %c3 = arith.constant 3 : index
    %c0_58 = arith.constant 0 : index
    %c0_59 = arith.constant 0 : index
    %66 = vector.load %arg5[%c3, %c0_58, %c0_59] : memref<4x32x32xf32, #tpu.memory_space<vmem>>, vector<1x32x32xf32>
    %67 = vector.shape_cast %66 : vector<1x32x32xf32> to vector<32x32xf32>
    %c3_60 = arith.constant 3 : index
    %c0_61 = arith.constant 0 : index
    %c0_62 = arith.constant 0 : index
    %68 = vector.load %arg6[%c3_60, %c0_61, %c0_62] : memref<4x96x96xf32, #tpu.memory_space<vmem>>, vector<1x96x96xf32>
    %69 = vector.shape_cast %68 : vector<1x96x96xf32> to vector<96x96xf32>
    %c3_63 = arith.constant 3 : index
    %c0_64 = arith.constant 0 : index
    %c0_65 = arith.constant 0 : index
    %70 = vector.load %arg7[%c3_63, %c0_64, %c0_65] : memref<4x96x32xf32, #tpu.memory_space<vmem>>, vector<1x96x32xf32>
    %71 = vector.shape_cast %70 : vector<1x96x32xf32> to vector<96x32xf32>
    %c3_66 = arith.constant 3 : index
    %c0_67 = arith.constant 0 : index
    %c0_68 = arith.constant 0 : index
    %72 = vector.load %arg8[%c3_66, %c0_67, %c0_68] : memref<4x96x32xf32, #tpu.memory_space<vmem>>, vector<1x96x32xf32>
    %73 = vector.shape_cast %72 : vector<1x96x32xf32> to vector<96x32xf32>
    %cst_69 = arith.constant dense<0.000000e+00> : vector<96x32xf32>
    %74 = tpu.matmul %65, %67, %cst_69 {dimension_numbers = #tpu.dot_dimension_numbers<[1], [0], [0], [1], [0, 0, 1, 1], [], []>} : vector<96x32xf32>, vector<32x32xf32>, vector<96x32xf32> -> vector<96x32xf32>
    %cst_70 = arith.constant dense<0.000000e+00> : vector<96x32xf32>
    %75 = tpu.matmul %69, %74, %cst_70 {dimension_numbers = #tpu.dot_dimension_numbers<[1], [0], [0], [1], [0, 0, 1, 1], [], []>} : vector<96x96xf32>, vector<96x32xf32>, vector<96x32xf32> -> vector<96x32xf32>
    %76 = arith.mulf %75, %71 : vector<96x32xf32>
    %77 = arith.addf %76, %73 : vector<96x32xf32>
    %cst_71 = arith.constant 0.000000e+00 : f32
    %78 = vector.broadcast %cst_71 : f32 to vector<96x32xf32>
    %79 = arith.cmpf oge, %77, %78 : vector<96x32xf32>
    %cst_72 = arith.constant 1.000000e-01 : f32
    %80 = vector.broadcast %cst_72 : f32 to vector<96x32xf32>
    %81 = arith.mulf %80, %77 : vector<96x32xf32>
    %82 = arith.select %79, %77, %81 : vector<96x32xi1>, vector<96x32xf32>
    %83 = arith.addf %82, %48 : vector<96x32xf32>
    %c0_73 = arith.constant 0 : index
    %c0_74 = arith.constant 0 : index
    %84 = vector.load %arg9[%c0_73, %c0_74] : memref<32x128xf32, #tpu.memory_space<vmem>>, vector<32x128xf32>
    %c0_75 = arith.constant 0 : index
    %c0_76 = arith.constant 0 : index
    %85 = vector.load %arg10[%c0_75, %c0_76] : memref<48x96xf32, #tpu.memory_space<vmem>>, vector<48x96xf32>
    %c0_77 = arith.constant 0 : index
    %c0_78 = arith.constant 0 : index
    %86 = vector.load %arg11[%c0_77, %c0_78] : memref<48x128xf32, #tpu.memory_space<vmem>>, vector<48x128xf32>
    %c0_79 = arith.constant 0 : index
    %c0_80 = arith.constant 0 : index
    %87 = vector.load %arg12[%c0_79, %c0_80] : memref<48x128xf32, #tpu.memory_space<vmem>>, vector<48x128xf32>
    %cst_81 = arith.constant dense<0.000000e+00> : vector<96x128xf32>
    %88 = tpu.matmul %83, %84, %cst_81 {dimension_numbers = #tpu.dot_dimension_numbers<[1], [0], [0], [1], [0, 0, 1, 1], [], []>} : vector<96x32xf32>, vector<32x128xf32>, vector<96x128xf32> -> vector<96x128xf32>
    %cst_82 = arith.constant dense<0.000000e+00> : vector<48x128xf32>
    %89 = tpu.matmul %85, %88, %cst_82 {dimension_numbers = #tpu.dot_dimension_numbers<[1], [0], [0], [1], [0, 0, 1, 1], [], []>} : vector<48x96xf32>, vector<96x128xf32>, vector<48x128xf32> -> vector<48x128xf32>
    %90 = arith.mulf %89, %86 : vector<48x128xf32>
    %91 = arith.addf %90, %87 : vector<48x128xf32>
    %cst_83 = arith.constant 0.000000e+00 : f32
    %92 = vector.broadcast %cst_83 : f32 to vector<48x128xf32>
    %93 = arith.cmpf oge, %91, %92 : vector<48x128xf32>
    %cst_84 = arith.constant 1.000000e-01 : f32
    %94 = vector.broadcast %cst_84 : f32 to vector<48x128xf32>
    %95 = arith.mulf %94, %91 : vector<48x128xf32>
    %96 = arith.select %93, %91, %95 : vector<48x128xi1>, vector<48x128xf32>
    %c0_85 = arith.constant 0 : index
    %c0_86 = arith.constant 0 : index
    %97 = vector.load %arg13[%c0_85, %c0_86] : memref<128x64xf32, #tpu.memory_space<vmem>>, vector<128x64xf32>
    %c0_87 = arith.constant 0 : index
    %c0_88 = arith.constant 0 : index
    %98 = vector.load %arg14[%c0_87, %c0_88] : memref<16x48xf32, #tpu.memory_space<vmem>>, vector<16x48xf32>
    %c0_89 = arith.constant 0 : index
    %c0_90 = arith.constant 0 : index
    %99 = vector.load %arg15[%c0_89, %c0_90] : memref<16x64xf32, #tpu.memory_space<vmem>>, vector<16x64xf32>
    %c0_91 = arith.constant 0 : index
    %c0_92 = arith.constant 0 : index
    %100 = vector.load %arg16[%c0_91, %c0_92] : memref<16x64xf32, #tpu.memory_space<vmem>>, vector<16x64xf32>
    %cst_93 = arith.constant dense<0.000000e+00> : vector<48x64xf32>
    %101 = tpu.matmul %96, %97, %cst_93 {dimension_numbers = #tpu.dot_dimension_numbers<[1], [0], [0], [1], [0, 0, 1, 1], [], []>} : vector<48x128xf32>, vector<128x64xf32>, vector<48x64xf32> -> vector<48x64xf32>
    %cst_94 = arith.constant dense<0.000000e+00> : vector<16x64xf32>
    %102 = tpu.matmul %98, %101, %cst_94 {dimension_numbers = #tpu.dot_dimension_numbers<[1], [0], [0], [1], [0, 0, 1, 1], [], []>} : vector<16x48xf32>, vector<48x64xf32>, vector<16x64xf32> -> vector<16x64xf32>
    %103 = arith.mulf %102, %99 : vector<16x64xf32>
    %104 = arith.addf %103, %100 : vector<16x64xf32>
    %cst_95 = arith.constant 0.000000e+00 : f32
    %105 = vector.broadcast %cst_95 : f32 to vector<16x64xf32>
    %106 = arith.cmpf oge, %104, %105 : vector<16x64xf32>
    %cst_96 = arith.constant 1.000000e-01 : f32
    %107 = vector.broadcast %cst_96 : f32 to vector<16x64xf32>
    %108 = arith.mulf %107, %104 : vector<16x64xf32>
    %109 = arith.select %106, %104, %108 : vector<16x64xi1>, vector<16x64xf32>
    %c0_97 = arith.constant 0 : index
    %c0_98 = arith.constant 0 : index
    %110 = vector.load %arg17[%c0_97, %c0_98] : memref<64x256xf32, #tpu.memory_space<vmem>>, vector<64x256xf32>
    %cst_99 = arith.constant dense<0.000000e+00> : vector<16x256xf32>
    %111 = tpu.matmul %109, %110, %cst_99 {dimension_numbers = #tpu.dot_dimension_numbers<[1], [0], [0], [1], [0, 0, 1, 1], [], []>} : vector<16x64xf32>, vector<64x256xf32>, vector<16x256xf32> -> vector<16x256xf32>
    %c0_100 = arith.constant 0 : index
    %c0_101 = arith.constant 0 : index
    %112 = vector.load %arg19[%c0_100, %c0_101] : memref<2x16xf32, #tpu.memory_space<vmem>>, vector<2x16xf32>
    %c0_102 = arith.constant 0 : index
    %c0_103 = arith.constant 0 : index
    %113 = vector.load %arg18[%c0_102, %c0_103] : memref<16x256xf32, #tpu.memory_space<vmem>>, vector<16x256xf32>
    %114 = arith.mulf %111, %113 : vector<16x256xf32>
    %cst_104 = arith.constant dense<0.000000e+00> : vector<2x256xf32>
    %115 = tpu.matmul %112, %114, %cst_104 {dimension_numbers = #tpu.dot_dimension_numbers<[1], [0], [0], [1], [0, 0, 1, 1], [], []>} : vector<2x16xf32>, vector<16x256xf32>, vector<2x256xf32> -> vector<2x256xf32>
    %c0_105 = arith.constant 0 : index
    %c0_106 = arith.constant 0 : index
    %116 = vector.load %arg20[%c0_105, %c0_106] : memref<256x16xf32, #tpu.memory_space<vmem>>, vector<256x16xf32>
    %cst_107 = arith.constant dense<0.000000e+00> : vector<2x16xf32>
    %117 = tpu.matmul %115, %116, %cst_107 {dimension_numbers = #tpu.dot_dimension_numbers<[1], [0], [0], [1], [0, 0, 1, 1], [], []>} : vector<2x256xf32>, vector<256x16xf32>, vector<2x16xf32> -> vector<2x16xf32>
    %c0_108 = arith.constant 0 : index
    %c0_109 = arith.constant 0 : index
    %118 = vector.load %arg22[%c0_108, %c0_109] : memref<1x16xf32, #tpu.memory_space<vmem>>, vector<1x16xf32>
    %119 = vector.broadcast %118 : vector<1x16xf32> to vector<2x16xf32>
    %120 = arith.addf %117, %119 : vector<2x16xf32>
    %c0_110 = arith.constant 0 : index
    %c0_111 = arith.constant 0 : index
    %121 = vector.load %arg21[%c0_110, %c0_111] : memref<256x16xf32, #tpu.memory_space<vmem>>, vector<256x16xf32>
    %cst_112 = arith.constant dense<0.000000e+00> : vector<2x16xf32>
    %122 = tpu.matmul %115, %121, %cst_112 {dimension_numbers = #tpu.dot_dimension_numbers<[1], [0], [0], [1], [0, 0, 1, 1], [], []>} : vector<2x256xf32>, vector<256x16xf32>, vector<2x16xf32> -> vector<2x16xf32>
    %c0_113 = arith.constant 0 : index
    %c0_114 = arith.constant 0 : index
    %123 = vector.load %arg23[%c0_113, %c0_114] : memref<1x16xf32, #tpu.memory_space<vmem>>, vector<1x16xf32>
    %124 = vector.broadcast %123 : vector<1x16xf32> to vector<2x16xf32>
    %125 = arith.addf %122, %124 : vector<2x16xf32>
    %cst_115 = arith.constant -5.000000e+00 : f32
    %cst_116 = arith.constant 5.000000e+00 : f32
    %126 = vector.broadcast %cst_115 : f32 to vector<2x16xf32>
    %127 = arith.maximumf %126, %125 : vector<2x16xf32>
    %128 = vector.broadcast %cst_116 : f32 to vector<2x16xf32>
    %129 = arith.minimumf %128, %127 : vector<2x16xf32>
    %cst_117 = arith.constant 5.000000e-01 : f32
    %130 = vector.broadcast %cst_117 : f32 to vector<2x16xf32>
    %131 = arith.mulf %129, %130 : vector<2x16xf32>
    %132 = math.exp %131 : vector<2x16xf32>
    %c0_118 = arith.constant 0 : index
    %c0_119 = arith.constant 0 : index
    %133 = vector.load %arg24[%c0_118, %c0_119] : memref<2x16xf32, #tpu.memory_space<vmem>>, vector<2x16xf32>
    %134 = arith.mulf %132, %133 : vector<2x16xf32>
    %135 = arith.addf %120, %134 : vector<2x16xf32>
    %c0_120 = arith.constant 0 : index
    %c0_121 = arith.constant 0 : index
    %136 = vector.load %arg25[%c0_120, %c0_121] : memref<2x16xf32, #tpu.memory_space<vmem>>, vector<2x16xf32>
    tpu.vector_store %arg25[%c0_120, %c0_121], %135 {strides = array<i32>} : memref<2x16xf32, #tpu.memory_space<vmem>>, vector<2x16xf32>,
    %137 = math.exp %129 : vector<2x16xf32>
    %138 = arith.mulf %120, %120 : vector<2x16xf32>
    %139 = arith.addf %137, %138 : vector<2x16xf32>
    %cst_122 = arith.constant 1.000000e+00 : f32
    %140 = vector.broadcast %cst_122 : f32 to vector<2x16xf32>
    %141 = arith.subf %139, %140 : vector<2x16xf32>
    %142 = arith.subf %141, %129 : vector<2x16xf32>
    %cst_123 = arith.constant dense<0.000000e+00> : vector<2xf32>
    %143 = vector.multi_reduction <add>, %142, %cst_123 [1] : vector<2x16xf32> to vector<2xf32>
    %144 = vector.shape_cast %143 : vector<2xf32> to vector<2x1xf32>
    %cst_124 = arith.constant dense<0.000000e+00> : vector<1xf32>
    %145 = vector.multi_reduction <add>, %144, %cst_124 [0] : vector<2x1xf32> to vector<1xf32>
    %146 = vector.shape_cast %145 : vector<1xf32> to vector<1x1xf32>
    %cst_125 = arith.constant 2.500000e-01 : f32
    %147 = vector.broadcast %cst_125 : f32 to vector<1x1xf32>
    %148 = arith.mulf %147, %146 : vector<1x1xf32>
    %c0_126 = arith.constant 0 : index
    %c0_127 = arith.constant 0 : index
    %149 = vector.load %arg26[%c0_126, %c0_127] : memref<1x1xf32, #tpu.memory_space<vmem>>, vector<1x1xf32>
    tpu.vector_store %arg26[%c0_126, %c0_127], %148 {strides = array<i32>} : memref<1x1xf32, #tpu.memory_space<vmem>>, vector<1x1xf32>,
    return
  }
}

</mosaic_0001>

<llo_original>
// kernel: vgae_encoder_forward.1
$region0: #{vgae_encoder_forward.1}
  #allocation0 [shape = 'u32[]', space=smem, size = 0x4, offset = 0x4, fixed_abs, tag = 'smem constant byte address 0x4 - core index']
  #allocation1 [shape = 'u32[72,128]{1,0:T(1,128)}', space=vmem, size = 0x9000, scoped, tag = 'internal scratch']
  %s0 = inlined_call_operand.vmem [shape: f32[96,16], index: 0, kind: input, shape index: {}]
  %s1 = inlined_call_operand.vmem [shape: f32[16,32], index: 1, kind: input, shape index: {}]
  %s2 = inlined_call_operand.vmem [shape: f32[96,96], index: 2, kind: input, shape index: {}]
  %s3 = inlined_call_operand.vmem [shape: f32[96,32], index: 3, kind: input, shape index: {}]
  %s4 = inlined_call_operand.vmem [shape: f32[96,32], index: 4, kind: input, shape index: {}]
  %s5 = inlined_call_operand.vmem [shape: f32[4,32,32], index: 5, kind: input, shape index: {}]
  %s6 = inlined_call_operand.vmem [shape: f32[4,96,96], index: 6, kind: input, shape index: {}]
  %s7 = inlined_call_operand.vmem [shape: f32[4,96,32], index: 7, kind: input, shape index: {}]
  %s8 = inlined_call_operand.vmem [shape: f32[4,96,32], index: 8, kind: input, shape index: {}]
  %s9 = inlined_call_operand.vmem [shape: f32[32,128], index: 9, kind: input, shape index: {}]
  %s10 = inlined_call_operand.vmem [shape: f32[48,96], index: 10, kind: input, shape index: {}]
  %s11 = inlined_call_operand.vmem [shape: f32[48,128], index: 11, kind: input, shape index: {}]
  %s12 = inlined_call_operand.vmem [shape: f32[48,128], index: 12, kind: input, shape index: {}]
  %s13 = inlined_call_operand.vmem [shape: f32[128,64], index: 13, kind: input, shape index: {}]
  %s14 = inlined_call_operand.vmem [shape: f32[16,48], index: 14, kind: input, shape index: {}]
  %s15 = inlined_call_operand.vmem [shape: f32[16,64], index: 15, kind: input, shape index: {}]
  %s16 = inlined_call_operand.vmem [shape: f32[16,64], index: 16, kind: input, shape index: {}]
  %s17 = inlined_call_operand.vmem [shape: f32[64,256], index: 17, kind: input, shape index: {}]
  %s18 = inlined_call_operand.vmem [shape: f32[16,256], index: 18, kind: input, shape index: {}]
  %s19 = inlined_call_operand.vmem [shape: f32[2,16], index: 19, kind: input, shape index: {}]
  %s20 = inlined_call_operand.vmem [shape: f32[256,16], index: 20, kind: input, shape index: {}]
  %s21 = inlined_call_operand.vmem [shape: f32[256,16], index: 21, kind: input, shape index: {}]
  %s22 = inlined_call_operand.vmem [shape: f32[1,16], index: 22, kind: input, shape index: {}]
  %s23 = inlined_call_operand.vmem [shape: f32[1,16], index: 23, kind: input, shape index: {}]
  %s24 = inlined_call_operand.vmem [shape: f32[2,16], index: 24, kind: input, shape index: {}]
  %s25 = inlined_call_operand.hbm [shape: f32[2,16], index: 25, kind: output, shape index: {0}]
  %s26 = inlined_call_operand.hbm [shape: f32[1,1], index: 26, kind: output, shape index: {1}]
  %27 = xla_tuple %s25, %s26
  %s28 = sld [smem:[#allocation0]]
  $region118: #{vgae_encoder_forward.1} parent=0
    _
  %s30 = ssub.s32 1, %s28
  %s31 = scalar_select 0, %s30, %s28
  $region1: #{vgae_encoder_forward.1} parent=0
    #allocation2 [shape = 'u8[1024]{0}', space=vmem, size = 0x400, scoped, tag = 'output window, operand 0, single buffered']
    #allocation3 [shape = 's32[1]{0}', space=sflag, size = 0x4, scoped, tag = 'scoped memory for vgae_encoder_forward.1']
    #allocation4 [shape = 'u8[512]{0}', space=vmem, size = 0x400, scoped, tag = 'output window, operand 1, single buffered']
    #allocation5 [shape = 's32[1]{0}', space=sflag, size = 0x4, scoped, tag = 'scoped memory for vgae_encoder_forward.1']
    %32 = vsyncpa [#allocation3], 0
    %33 = vsyncpa [#allocation5], 0
    // Predicated region
    $region2: #{vgae_encoder_forward.1} parent=1 // pred_check
      _
    $region3: #{vgae_encoder_forward.1} parent=1 // pred_check_branch
      %35 = sbr.rel (0) target = $region5
    $region4: #{vgae_encoder_forward.1} parent=1 // pred_region
      _
    $region5: #{vgae_encoder_forward.1} parent=1 // pred_fallthru
      _
    // Predicated region
    $region6: #{vgae_encoder_forward.1} parent=1 // pred_check
      _
    $region7: #{vgae_encoder_forward.1} parent=1 // pred_check_branch
      %37 = sbr.rel (0) target = $region9
    $region8: #{vgae_encoder_forward.1} parent=1 // pred_region
      _
    $region9: #{vgae_encoder_forward.1} parent=1 // pred_fallthru
      _
    // Predicated region
    $region10: #{vgae_encoder_forward.1} parent=1 // pred_check
      _
    $region11: #{vgae_encoder_forward.1} parent=1 // pred_check_branch
      %39 = sbr.rel (0) target = $region13
    $region12: #{vgae_encoder_forward.1} parent=1 // pred_region
      _
    $region13: #{vgae_encoder_forward.1} parent=1 // pred_fallthru
      _
    // Predicated region
    $region14: #{vgae_encoder_forward.1} parent=1 // pred_check
      _
    $region15: #{vgae_encoder_forward.1} parent=1 // pred_check_branch
      %41 = sbr.rel (0) target = $region17
    $region16: #{vgae_encoder_forward.1} parent=1 // pred_region
      _
    $region17: #{vgae_encoder_forward.1} parent=1 // pred_fallthru
      _
    // Predicated region
    $region18: #{vgae_encoder_forward.1} parent=1 // pred_check
      _
    $region19: #{vgae_encoder_forward.1} parent=1 // pred_check_branch
      %43 = sbr.rel (0) target = $region21
    $region20: #{vgae_encoder_forward.1} parent=1 // pred_region
      _
    $region21: #{vgae_encoder_forward.1} parent=1 // pred_fallthru
      _
    // Predicated region
    $region22: #{vgae_encoder_forward.1} parent=1 // pred_check
      _
    $region23: #{vgae_encoder_forward.1} parent=1 // pred_check_branch
      %45 = sbr.rel (0) target = $region25
    $region24: #{vgae_encoder_forward.1} parent=1 // pred_region
      _
    $region25: #{vgae_encoder_forward.1} parent=1 // pred_fallthru
      _
    // Predicated region
    $region26: #{vgae_encoder_forward.1} parent=1 // pred_check
      _
    $region27: #{vgae_encoder_forward.1} parent=1 // pred_check_branch
      %47 = sbr.rel (0) target = $region29
    $region28: #{vgae_encoder_forward.1} parent=1 // pred_region
      _
    $region29: #{vgae_encoder_forward.1} parent=1 // pred_fallthru
      _
    // Predicated region
    $region30: #{vgae_encoder_forward.1} parent=1 // pred_check
      _
    $region31: #{vgae_encoder_forward.1} parent=1 // pred_check_branch
      %49 = sbr.rel (0) target = $region33
    $region32: #{vgae_encoder_forward.1} parent=1 // pred_region
      _
    $region33: #{vgae_encoder_forward.1} parent=1 // pred_fallthru
      _
    // Predicated region
    $region34: #{vgae_encoder_forward.1} parent=1 // pred_check
      _
    $region35: #{vgae_encoder_forward.1} parent=1 // pred_check_branch
      %51 = sbr.rel (0) target = $region37
    $region36: #{vgae_encoder_forward.1} parent=1 // pred_region
      _
    $region37: #{vgae_encoder_forward.1} parent=1 // pred_fallthru
      _
    // Predicated region
    $region38: #{vgae_encoder_forward.1} parent=1 // pred_check
      _
    $region39: #{vgae_encoder_forward.1} parent=1 // pred_check_branch
      %53 = sbr.rel (0) target = $region41
    $region40: #{vgae_encoder_forward.1} parent=1 // pred_region
      _
    $region41: #{vgae_encoder_forward.1} parent=1 // pred_fallthru
      _
    // Predicated region
    $region42: #{vgae_encoder_forward.1} parent=1 // pred_check
      _
    $region43: #{vgae_encoder_forward.1} parent=1 // pred_check_branch
      %55 = sbr.rel (0) target = $region45
    $region44: #{vgae_encoder_forward.1} parent=1 // pred_region
      _
    $region45: #{vgae_encoder_forward.1} parent=1 // pred_fallthru
      _
    // Predicated region
    $region46: #{vgae_encoder_forward.1} parent=1 // pred_check
      _
    $region47: #{vgae_encoder_forward.1} parent=1 // pred_check_branch
      %57 = sbr.rel (0) target = $region49
    $region48: #{vgae_encoder_forward.1} parent=1 // pred_region
      _
    $region49: #{vgae_encoder_forward.1} parent=1 // pred_fallthru
      _
    // Predicated region
    $region50: #{vgae_encoder_forward.1} parent=1 // pred_check
      _
    $region51: #{vgae_encoder_forward.1} parent=1 // pred_check_branch
      %59 = sbr.rel (0) target = $region53
    $region52: #{vgae_encoder_forward.1} parent=1 // pred_region
      _
    $region53: #{vgae_encoder_forward.1} parent=1 // pred_fallthru
      _
    // Predicated region
    $region54: #{vgae_encoder_forward.1} parent=1 // pred_check
      _
    $region55: #{vgae_encoder_forward.1} parent=1 // pred_check_branch
      %61 = sbr.rel (0) target = $region57
    $region56: #{vgae_encoder_forward.1} parent=1 // pred_region
      _
    $region57: #{vgae_encoder_forward.1} parent=1 // pred_fallthru
      _
    // Predicated region
    $region58: #{vgae_encoder_forward.1} parent=1 // pred_check
      _
    $region59: #{vgae_encoder_forward.1} parent=1 // pred_check_branch
      %63 = sbr.rel (0) target = $region61
    $region60: #{vgae_encoder_forward.1} parent=1 // pred_region
      _
    $region61: #{vgae_encoder_forward.1} parent=1 // pred_fallthru
      _
    // Predicated region
    $region62: #{vgae_encoder_forward.1} parent=1 // pred_check
      _
    $region63: #{vgae_encoder_forward.1} parent=1 // pred_check_branch
      %65 = sbr.rel (0) target = $region65
    $region64: #{vgae_encoder_forward.1} parent=1 // pred_region
      _
    $region65: #{vgae_encoder_forward.1} parent=1 // pred_fallthru
      _
    // Predicated region
    $region66: #{vgae_encoder_forward.1} parent=1 // pred_check
      _
    $region67: #{vgae_encoder_forward.1} parent=1 // pred_check_branch
      %67 = sbr.rel (0) target = $region69
    $region68: #{vgae_encoder_forward.1} parent=1 // pred_region
      _
    $region69: #{vgae_encoder_forward.1} parent=1 // pred_fallthru
      _
    // Predicated region
    $region70: #{vgae_encoder_forward.1} parent=1 // pred_check
      _
    $region71: #{vgae_encoder_forward.1} parent=1 // pred_check_branch
      %69 = sbr.rel (0) target = $region73
    $region72: #{vgae_encoder_forward.1} parent=1 // pred_region
      _
    $region73: #{vgae_encoder_forward.1} parent=1 // pred_fallthru
      _
    // Predicated region
    $region74: #{vgae_encoder_forward.1} parent=1 // pred_check
      _
    $region75: #{vgae_encoder_forward.1} parent=1 // pred_check_branch
      %71 = sbr.rel (0) target = $region77
    $region76: #{vgae_encoder_forward.1} parent=1 // pred_region
      _
    $region77: #{vgae_encoder_forward.1} parent=1 // pred_fallthru
      _
    // Predicated region
    $region78: #{vgae_encoder_forward.1} parent=1 // pred_check
      _
    $region79: #{vgae_encoder_forward.1} parent=1 // pred_check_branch
      %73 = sbr.rel (0) target = $region81
    $region80: #{vgae_encoder_forward.1} parent=1 // pred_region
      _
    $region81: #{vgae_encoder_forward.1} parent=1 // pred_fallthru
      _
    // Predicated region
    $region82: #{vgae_encoder_forward.1} parent=1 // pred_check
      _
    $region83: #{vgae_encoder_forward.1} parent=1 // pred_check_branch
      %75 = sbr.rel (0) target = $region85
    $region84: #{vgae_encoder_forward.1} parent=1 // pred_region
      _
    $region85: #{vgae_encoder_forward.1} parent=1 // pred_fallthru
      _
    // Predicated region
    $region86: #{vgae_encoder_forward.1} parent=1 // pred_check
      _
    $region87: #{vgae_encoder_forward.1} parent=1 // pred_check_branch
      %77 = sbr.rel (0) target = $region89
    $region88: #{vgae_encoder_forward.1} parent=1 // pred_region
      _
    $region89: #{vgae_encoder_forward.1} parent=1 // pred_fallthru
      _
    // Predicated region
    $region90: #{vgae_encoder_forward.1} parent=1 // pred_check
      _
    $region91: #{vgae_encoder_forward.1} parent=1 // pred_check_branch
      %79 = sbr.rel (0) target = $region93
    $region92: #{vgae_encoder_forward.1} parent=1 // pred_region
      _
    $region93: #{vgae_encoder_forward.1} parent=1 // pred_fallthru
      _
    // Predicated region
    $region94: #{vgae_encoder_forward.1} parent=1 // pred_check
      _
    $region95: #{vgae_encoder_forward.1} parent=1 // pred_check_branch
      %81 = sbr.rel (0) target = $region97
    $region96: #{vgae_encoder_forward.1} parent=1 // pred_region
      _
    $region97: #{vgae_encoder_forward.1} parent=1 // pred_fallthru
      _
    // Predicated region
    $region98: #{vgae_encoder_forward.1} parent=1 // pred_check
      _
    $region99: #{vgae_encoder_forward.1} parent=1 // pred_check_branch
      %83 = sbr.rel (0) target = $region101
    $region100: #{vgae_encoder_forward.1} parent=1 // pred_region
      _
    $region101: #{vgae_encoder_forward.1} parent=1 // pred_fallthru
      _
    %v84 = vld [vmem:[%s0] sm:$0xff]
    %v85 = vld [vmem:[%s0 + $0x8] sm:$0xff]
    %v86 = vld [vmem:[%s0 + $0x10] sm:$0xff]
    %v87 = vld [vmem:[%s0 + $0x18] sm:$0xff]
    %v88 = vld [vmem:[%s0 + $0x20] sm:$0xff]
    %v89 = vld [vmem:[%s0 + $0x28] sm:$0xff]
    %v90 = vld [vmem:[%s0 + $0x30] sm:$0xff]
    %v91 = vld [vmem:[%s0 + $0x38] sm:$0xff]
    %v92 = vld [vmem:[%s0 + $0x40] sm:$0xff]
    %v93 = vld [vmem:[%s0 + $0x48] sm:$0xff]
    %v94 = vld [vmem:[%s0 + $0x50] sm:$0xff]
    %v95 = vld [vmem:[%s0 + $0x58] sm:$0xff]
    %v96 = vld [vmem:[%s1] sm:$0xff]
    %v97 = vld [vmem:[%s1 + $0x8] sm:$0xff]
    %v98 = vld [vmem:[%s2] sm:$0xff]
    %v99 = vld [vmem:[%s2 + $0x8] sm:$0xff]
    %v100 = vld [vmem:[%s2 + $0x10] sm:$0xff]
    %v101 = vld [vmem:[%s2 + $0x18] sm:$0xff]
    %v102 = vld [vmem:[%s2 + $0x20] sm:$0xff]
    %v103 = vld [vmem:[%s2 + $0x28] sm:$0xff]
    %v104 = vld [vmem:[%s2 + $0x30] sm:$0xff]
    %v105 = vld [vmem:[%s2 + $0x38] sm:$0xff]
    %v106 = vld [vmem:[%s2 + $0x40] sm:$0xff]
    %v107 = vld [vmem:[%s2 + $0x48] sm:$0xff]
    %v108 = vld [vmem:[%s2 + $0x50] sm:$0xff]
    %v109 = vld [vmem:[%s2 + $0x58] sm:$0xff]
    %v110 = vld [vmem:[%s3] sm:$0xff]
    %v111 = vld [vmem:[%s3 + $0x8] sm:$0xff]
    %v112 = vld [vmem:[%s3 + $0x10] sm:$0xff]
    %v113 = vld [vmem:[%s3 + $0x18] sm:$0xff]
    %v114 = vld [vmem:[%s3 + $0x20] sm:$0xff]
    %v115 = vld [vmem:[%s3 + $0x28] sm:$0xff]
    %v116 = vld [vmem:[%s3 + $0x30] sm:$0xff]
    %v117 = vld [vmem:[%s3 + $0x38] sm:$0xff]
    %v118 = vld [vmem:[%s3 + $0x40] sm:$0xff]
    %v119 = vld [vmem:[%s3 + $0x48] sm:$0xff]
    %v120 = vld [vmem:[%s3 + $0x50] sm:$0xff]
    %v121 = vld [vmem:[%s3 + $0x58] sm:$0xff]
    %v122 = vld [vmem:[%s4] sm:$0xff]
    %v123 = vld [vmem:[%s4 + $0x8] sm:$0xff]
    %v124 = vld [vmem:[%s4 + $0x10] sm:$0xff]
    %v125 = vld [vmem:[%s4 + $0x18] sm:$0xff]
    %v126 = vld [vmem:[%s4 + $0x20] sm:$0xff]
    %v127 = vld [vmem:[%s4 + $0x28] sm:$0xff]
    %v128 = vld [vmem:[%s4 + $0x30] sm:$0xff]
    %v129 = vld [vmem:[%s4 + $0x38] sm:$0xff]
    %v130 = vld [vmem:[%s4 + $0x40] sm:$0xff]
    %v131 = vld [vmem:[%s4 + $0x48] sm:$0xff]
    %v132 = vld [vmem:[%s4 + $0x50] sm:$0xff]
    %v133 = vld [vmem:[%s4 + $0x58] sm:$0xff]
    %vm134 = vcmask 130048
    %v136 = vsel %vm134, %v84, 0
    %v139 = vsel %vm134, %v85, 0
    %v142 = vsel %vm134, %v86, 0
    %v145 = vsel %vm134, %v87, 0
    %v148 = vsel %vm134, %v88, 0
    %v151 = vsel %vm134, %v89, 0
    %v154 = vsel %vm134, %v90, 0
    %v157 = vsel %vm134, %v91, 0
    %v160 = vsel %vm134, %v92, 0
    %v163 = vsel %vm134, %v93, 0
    %v166 = vsel %vm134, %v94, 0
    %v169 = vsel %vm134, %v95, 0
    %171 = vmatpush.msra.mxu0 0.0
    %172 = vmatpush.msra.mxu0 0.0
    %173 = vmatpush.msra.mxu0 0.0
    %174 = vmatpush.msra.mxu0 0.0
    %175 = vmatpush.msra.mxu0 0.0
    %176 = vmatpush.msra.mxu0 0.0
    %177 = vmatpush.msra.mxu0 0.0
    %178 = vmatpush.msra.mxu0 0.0
    %179 = vmatpush.msra.mxu0 0.0
    %180 = vmatpush.msra.mxu0 0.0
    %181 = vmatpush.msra.mxu0 0.0
    %182 = vmatpush.msra.mxu0 0.0
    %183 = vmatpush.msra.mxu0 0.0
    %184 = vmatpush.msra.mxu0 0.0
    %185 = vmatpush.msra.mxu0 %v97
    %186 = vmatpush.msra.mxu0 %v96
    %187 = vmatmul.f32.gmra.mxu0 %v136
    %v188 = vpop.f32.mrf.mxu0
    %v189 = vadd.f32 0.0, %v188
    %190 = vmatmul.f32.gmra.mxu0 %v139
    %v191 = vpop.f32.mrf.mxu0
    %v192 = vadd.f32 0.0, %v191
    %193 = vmatmul.f32.gmra.mxu0 %v142
    %v194 = vpop.f32.mrf.mxu0
    %v195 = vadd.f32 0.0, %v194
    %196 = vmatmul.f32.gmra.mxu0 %v145
    %v197 = vpop.f32.mrf.mxu0
    %v198 = vadd.f32 0.0, %v197
    %199 = vmatmul.f32.gmra.mxu0 %v148
    %v200 = vpop.f32.mrf.mxu0
    %v201 = vadd.f32 0.0, %v200
    %202 = vmatmul.f32.gmra.mxu0 %v151
    %v203 = vpop.f32.mrf.mxu0
    %v204 = vadd.f32 0.0, %v203
    %205 = vmatmul.f32.gmra.mxu0 %v154
    %v206 = vpop.f32.mrf.mxu0
    %v207 = vadd.f32 0.0, %v206
    %208 = vmatmul.f32.gmra.mxu0 %v157
    %v209 = vpop.f32.mrf.mxu0
    %v210 = vadd.f32 0.0, %v209
    %211 = vmatmul.f32.gmra.mxu0 %v160
    %v212 = vpop.f32.mrf.mxu0
    %v213 = vadd.f32 0.0, %v212
    %214 = vmatmul.f32.gmra.mxu0 %v163
    %v215 = vpop.f32.mrf.mxu0
    %v216 = vadd.f32 0.0, %v215
    %217 = vmatmul.f32.gmra.mxu0 %v166
    %v218 = vpop.f32.mrf.mxu0
    %v219 = vadd.f32 0.0, %v218
    %220 = vmatmul.f32.gmra.mxu0 %v169
    %v221 = vpop.f32.mrf.mxu0
    %v222 = vadd.f32 0.0, %v221
    %223 = vdwg.mxu0
    %vm224 = vcmask 785408
    %v226 = vsel %vm224, %v98, 0
    %v229 = vsel %vm224, %v99, 0
    %v232 = vsel %vm224, %v100, 0
    %v235 = vsel %vm224, %v101, 0
    %v238 = vsel %vm224, %v102, 0
    %v241 = vsel %vm224, %v103, 0
    %v244 = vsel %vm224, %v104, 0
    %v247 = vsel %vm224, %v105, 0
    %v250 = vsel %vm224, %v106, 0
    %v253 = vsel %vm224, %v107, 0
    %v256 = vsel %vm224, %v108, 0
    %v259 = vsel %vm224, %v109, 0
    %261 = vmatpush.msra.mxu0 0.0
    %262 = vmatpush.msra.mxu0 0.0
    %263 = vmatpush.msra.mxu0 0.0
    %264 = vmatpush.msra.mxu0 0.0
    %265 = vmatpush.msra.mxu0 %v222
    %266 = vmatpush.msra.mxu0 %v219
    %267 = vmatpush.msra.mxu0 %v216
    %268 = vmatpush.msra.mxu0 %v213
    %269 = vmatpush.msra.mxu0 %v210
    %270 = vmatpush.msra.mxu0 %v207
    %271 = vmatpush.msra.mxu0 %v204
    %272 = vmatpush.msra.mxu0 %v201
    %273 = vmatpush.msra.mxu0 %v198
    %274 = vmatpush.msra.mxu0 %v195
    %275 = vmatpush.msra.mxu0 %v192
    %276 = vmatpush.msra.mxu0 %v189
    %277 = vmatmul.f32.gmra.mxu0 %v226
    %v278 = vpop.f32.mrf.mxu0
    %v279 = vadd.f32 0.0, %v278
    %280 = vmatmul.f32.gmra.mxu0 %v229
    %v281 = vpop.f32.mrf.mxu0
    %v282 = vadd.f32 0.0, %v281
    %283 = vmatmul.f32.gmra.mxu0 %v232
    %v284 = vpop.f32.mrf.mxu0
    %v285 = vadd.f32 0.0, %v284
    %286 = vmatmul.f32.gmra.mxu0 %v235
    %v287 = vpop.f32.mrf.mxu0
    %v288 = vadd.f32 0.0, %v287
    %289 = vmatmul.f32.gmra.mxu0 %v238
    %v290 = vpop.f32.mrf.mxu0
    %v291 = vadd.f32 0.0, %v290
    %292 = vmatmul.f32.gmra.mxu0 %v241
    %v293 = vpop.f32.mrf.mxu0
    %v294 = vadd.f32 0.0, %v293
    %295 = vmatmul.f32.gmra.mxu0 %v244
    %v296 = vpop.f32.mrf.mxu0
    %v297 = vadd.f32 0.0, %v296
    %298 = vmatmul.f32.gmra.mxu0 %v247
    %v299 = vpop.f32.mrf.mxu0
    %v300 = vadd.f32 0.0, %v299
    %301 = vmatmul.f32.gmra.mxu0 %v250
    %v302 = vpop.f32.mrf.mxu0
    %v303 = vadd.f32 0.0, %v302
    %304 = vmatmul.f32.gmra.mxu0 %v253
    %v305 = vpop.f32.mrf.mxu0
    %v306 = vadd.f32 0.0, %v305
    %307 = vmatmul.f32.gmra.mxu0 %v256
    %v308 = vpop.f32.mrf.mxu0
    %v309 = vadd.f32 0.0, %v308
    %310 = vmatmul.f32.gmra.mxu0 %v259
    %v311 = vpop.f32.mrf.mxu0
    %v312 = vadd.f32 0.0, %v311
    %313 = vdwg.mxu0
    %v314 = vmul.f32 %v279, %v110
    %v315 = vmul.f32 %v282, %v111
    %v316 = vmul.f32 %v285, %v112
    %v317 = vmul.f32 %v288, %v113
    %v318 = vmul.f32 %v291, %v114
    %v319 = vmul.f32 %v294, %v115
    %v320 = vmul.f32 %v297, %v116
    %v321 = vmul.f32 %v300, %v117
    %v322 = vmul.f32 %v303, %v118
    %v323 = vmul.f32 %v306, %v119
    %v324 = vmul.f32 %v309, %v120
    %v325 = vmul.f32 %v312, %v121
    %v326 = vadd.f32 %v314, %v122
    %v327 = vadd.f32 %v315, %v123
    %v328 = vadd.f32 %v316, %v124
    %v329 = vadd.f32 %v317, %v125
    %v330 = vadd.f32 %v318, %v126
    %v331 = vadd.f32 %v319, %v127
    %v332 = vadd.f32 %v320, %v128
    %v333 = vadd.f32 %v321, %v129
    %v334 = vadd.f32 %v322, %v130
    %v335 = vadd.f32 %v323, %v131
    %v336 = vadd.f32 %v324, %v132
    %v337 = vadd.f32 %v325, %v133
    %vm338 = vcmp.ge.f32.partialorder %v326, 0.0
    %vm339 = vcmp.ge.f32.partialorder %v327, 0.0
    %vm340 = vcmp.ge.f32.partialorder %v328, 0.0
    %vm341 = vcmp.ge.f32.partialorder %v329, 0.0
    %vm342 = vcmp.ge.f32.partialorder %v330, 0.0
    %vm343 = vcmp.ge.f32.partialorder %v331, 0.0
    %vm344 = vcmp.ge.f32.partialorder %v332, 0.0
    %vm345 = vcmp.ge.f32.partialorder %v333, 0.0
    %vm346 = vcmp.ge.f32.partialorder %v334, 0.0
    %vm347 = vcmp.ge.f32.partialorder %v335, 0.0
    %vm348 = vcmp.ge.f32.partialorder %v336, 0.0
    %vm349 = vcmp.ge.f32.partialorder %v337, 0.0
    %v350 = vmul.f32 %v326, 0.1
    %v351 = vmul.f32 %v327, 0.1
    %v352 = vmul.f32 %v328, 0.1
    %v353 = vmul.f32 %v329, 0.1
    %v354 = vmul.f32 %v330, 0.1
    %v355 = vmul.f32 %v331, 0.1
    %v356 = vmul.f32 %v332, 0.1
    %v357 = vmul.f32 %v333, 0.1
    %v358 = vmul.f32 %v334, 0.1
    %v359 = vmul.f32 %v335, 0.1
    %v360 = vmul.f32 %v336, 0.1
    %v361 = vmul.f32 %v337, 0.1
    %v362 = vsel %vm338, %v326, %v350
    %v363 = vsel %vm339, %v327, %v351
    %v364 = vsel %vm340, %v328, %v352
    %v365 = vsel %vm341, %v329, %v353
    %v366 = vsel %vm342, %v330, %v354
    %v367 = vsel %vm343, %v331, %v355
    %v368 = vsel %vm344, %v332, %v356
    %v369 = vsel %vm345, %v333, %v357
    %v370 = vsel %vm346, %v334, %v358
    %v371 = vsel %vm347, %v335, %v359
    %v372 = vsel %vm348, %v336, %v360
    %v373 = vsel %vm349, %v337, %v361
    %v374 = vld [vmem:[%s5] sm:$0xff]
    %v375 = vld [vmem:[%s5 + $0x8] sm:$0xff]
    %v376 = vld [vmem:[%s5 + $0x10] sm:$0xff]
    %v377 = vld [vmem:[%s5 + $0x18] sm:$0xff]
    %v378 = vld [vmem:[%s6] sm:$0xff]
    %v379 = vld [vmem:[%s6 + $0x8] sm:$0xff]
    %v380 = vld [vmem:[%s6 + $0x10] sm:$0xff]
    %v381 = vld [vmem:[%s6 + $0x18] sm:$0xff]
    %v382 = vld [vmem:[%s6 + $0x20] sm:$0xff]
    %v383 = vld [vmem:[%s6 + $0x28] sm:$0xff]
    %v384 = vld [vmem:[%s6 + $0x30] sm:$0xff]
    %v385 = vld [vmem:[%s6 + $0x38] sm:$0xff]
    %v386 = vld [vmem:[%s6 + $0x40] sm:$0xff]
    %v387 = vld [vmem:[%s6 + $0x48] sm:$0xff]
    %v388 = vld [vmem:[%s6 + $0x50] sm:$0xff]
    %v389 = vld [vmem:[%s6 + $0x58] sm:$0xff]
    %v390 = vld [vmem:[%s7] sm:$0xff]
    %v391 = vld [vmem:[%s7 + $0x8] sm:$0xff]
    %v392 = vld [vmem:[%s7 + $0x10] sm:$0xff]
    %v393 = vld [vmem:[%s7 + $0x18] sm:$0xff]
    %v394 = vld [vmem:[%s7 + $0x20] sm:$0xff]
    %v395 = vld [vmem:[%s7 + $0x28] sm:$0xff]
    %v396 = vld [vmem:[%s7 + $0x30] sm:$0xff]
    %v397 = vld [vmem:[%s7 + $0x38] sm:$0xff]
    %v398 = vld [vmem:[%s7 + $0x40] sm:$0xff]
    %v399 = vld [vmem:[%s7 + $0x48] sm:$0xff]
    %v400 = vld [vmem:[%s7 + $0x50] sm:$0xff]
    %v401 = vld [vmem:[%s7 + $0x58] sm:$0xff]
    %v402 = vld [vmem:[%s8] sm:$0xff]
    %v403 = vld [vmem:[%s8 + $0x8] sm:$0xff]
    %v404 = vld [vmem:[%s8 + $0x10] sm:$0xff]
    %v405 = vld [vmem:[%s8 + $0x18] sm:$0xff]
    %v406 = vld [vmem:[%s8 + $0x20] sm:$0xff]
    %v407 = vld [vmem:[%s8 + $0x28] sm:$0xff]
    %v408 = vld [vmem:[%s8 + $0x30] sm:$0xff]
    %v409 = vld [vmem:[%s8 + $0x38] sm:$0xff]
    %v410 = vld [vmem:[%s8 + $0x40] sm:$0xff]
    %v411 = vld [vmem:[%s8 + $0x48] sm:$0xff]
    %v412 = vld [vmem:[%s8 + $0x50] sm:$0xff]
    %v413 = vld [vmem:[%s8 + $0x58] sm:$0xff]
    %vm414 = vcmask 261120
    %v416 = vsel %vm414, %v362, 0
    %v419 = vsel %vm414, %v363, 0
    %v422 = vsel %vm414, %v364, 0
    %v425 = vsel %vm414, %v365, 0
    %v428 = vsel %vm414, %v366, 0
    %v431 = vsel %vm414, %v367, 0
    %v434 = vsel %vm414, %v368, 0
    %v437 = vsel %vm414, %v369, 0
    %v440 = vsel %vm414, %v370, 0
    %v443 = vsel %vm414, %v371, 0
    %v446 = vsel %vm414, %v372, 0
    %v449 = vsel %vm414, %v373, 0
    %451 = vmatpush.msra.mxu0 0.0
    %452 = vmatpush.msra.mxu0 0.0
    %453 = vmatpush.msra.mxu0 0.0
    %454 = vmatpush.msra.mxu0 0.0
    %455 = vmatpush.msra.mxu0 0.0
    %456 = vmatpush.msra.mxu0 0.0
    %457 = vmatpush.msra.mxu0 0.0
    %458 = vmatpush.msra.mxu0 0.0
    %459 = vmatpush.msra.mxu0 0.0
    %460 = vmatpush.msra.mxu0 0.0
    %461 = vmatpush.msra.mxu0 0.0
    %462 = vmatpush.msra.mxu0 0.0
    %463 = vmatpush.msra.mxu0 %v377
    %464 = vmatpush.msra.mxu0 %v376
    %465 = vmatpush.msra.mxu0 %v375
    %466 = vmatpush.msra.mxu0 %v374
    %467 = vmatmul.f32.gmra.mxu0 %v416
    %v468 = vpop.f32.mrf.mxu0
    %v469 = vadd.f32 0.0, %v468
    %470 = vmatmul.f32.gmra.mxu0 %v419
    %v471 = vpop.f32.mrf.mxu0
    %v472 = vadd.f32 0.0, %v471
    %473 = vmatmul.f32.gmra.mxu0 %v422
    %v474 = vpop.f32.mrf.mxu0
    %v475 = vadd.f32 0.0, %v474
    %476 = vmatmul.f32.gmra.mxu0 %v425
    %v477 = vpop.f32.mrf.mxu0
    %v478 = vadd.f32 0.0, %v477
    %479 = vmatmul.f32.gmra.mxu0 %v428
    %v480 = vpop.f32.mrf.mxu0
    %v481 = vadd.f32 0.0, %v480
    %482 = vmatmul.f32.gmra.mxu0 %v431
    %v483 = vpop.f32.mrf.mxu0
    %v484 = vadd.f32 0.0, %v483
    %485 = vmatmul.f32.gmra.mxu0 %v434
    %v486 = vpop.f32.mrf.mxu0
    %v487 = vadd.f32 0.0, %v486
    %488 = vmatmul.f32.gmra.mxu0 %v437
    %v489 = vpop.f32.mrf.mxu0
    %v490 = vadd.f32 0.0, %v489
    %491 = vmatmul.f32.gmra.mxu0 %v440
    %v492 = vpop.f32.mrf.mxu0
    %v493 = vadd.f32 0.0, %v492
    %494 = vmatmul.f32.gmra.mxu0 %v443
    %v495 = vpop.f32.mrf.mxu0
    %v496 = vadd.f32 0.0, %v495
    %497 = vmatmul.f32.gmra.mxu0 %v446
    %v498 = vpop.f32.mrf.mxu0
    %v499 = vadd.f32 0.0, %v498
    %500 = vmatmul.f32.gmra.mxu0 %v449
    %v501 = vpop.f32.mrf.mxu0
    %v502 = vadd.f32 0.0, %v501
    %503 = vdwg.mxu0
    %v505 = vsel %vm224, %v378, 0
    %v508 = vsel %vm224, %v379, 0
    %v511 = vsel %vm224, %v380, 0
    %v514 = vsel %vm224, %v381, 0
    %v517 = vsel %vm224, %v382, 0
    %v520 = vsel %vm224, %v383, 0
    %v523 = vsel %vm224, %v384, 0
    %v526 = vsel %vm224, %v385, 0
    %v529 = vsel %vm224, %v386, 0
    %v532 = vsel %vm224, %v387, 0
    %v535 = vsel %vm224, %v388, 0
    %v538 = vsel %vm224, %v389, 0
    %540 = vmatpush.msra.mxu0 0.0
    %541 = vmatpush.msra.mxu0 0.0
    %542 = vmatpush.msra.mxu0 0.0
    %543 = vmatpush.msra.mxu0 0.0
    %544 = vmatpush.msra.mxu0 %v502
    %545 = vmatpush.msra.mxu0 %v499
    %546 = vmatpush.msra.mxu0 %v496
    %547 = vmatpush.msra.mxu0 %v493
    %548 = vmatpush.msra.mxu0 %v490
    %549 = vmatpush.msra.mxu0 %v487
    %550 = vmatpush.msra.mxu0 %v484
    %551 = vmatpush.msra.mxu0 %v481
    %552 = vmatpush.msra.mxu0 %v478
    %553 = vmatpush.msra.mxu0 %v475
    %554 = vmatpush.msra.mxu0 %v472
    %555 = vmatpush.msra.mxu0 %v469
    %556 = vmatmul.f32.gmra.mxu0 %v505
    %v557 = vpop.f32.mrf.mxu0
    %v558 = vadd.f32 0.0, %v557
    %559 = vmatmul.f32.gmra.mxu0 %v508
    %v560 = vpop.f32.mrf.mxu0
    %v561 = vadd.f32 0.0, %v560
    %562 = vmatmul.f32.gmra.mxu0 %v511
    %v563 = vpop.f32.mrf.mxu0
    %v564 = vadd.f32 0.0, %v563
    %565 = vmatmul.f32.gmra.mxu0 %v514
    %v566 = vpop.f32.mrf.mxu0
    %v567 = vadd.f32 0.0, %v566
    %568 = vmatmul.f32.gmra.mxu0 %v517
    %v569 = vpop.f32.mrf.mxu0
    %v570 = vadd.f32 0.0, %v569
    %571 = vmatmul.f32.gmra.mxu0 %v520
    %v572 = vpop.f32.mrf.mxu0
    %v573 = vadd.f32 0.0, %v572
    %574 = vmatmul.f32.gmra.mxu0 %v523
    %v575 = vpop.f32.mrf.mxu0
    %v576 = vadd.f32 0.0, %v575
    %577 = vmatmul.f32.gmra.mxu0 %v526
    %v578 = vpop.f32.mrf.mxu0
    %v579 = vadd.f32 0.0, %v578
    %580 = vmatmul.f32.gmra.mxu0 %v529
    %v581 = vpop.f32.mrf.mxu0
    %v582 = vadd.f32 0.0, %v581
    %583 = vmatmul.f32.gmra.mxu0 %v532
    %v584 = vpop.f32.mrf.mxu0
    %v585 = vadd.f32 0.0, %v584
    %586 = vmatmul.f32.gmra.mxu0 %v535
    %v587 = vpop.f32.mrf.mxu0
    %v588 = vadd.f32 0.0, %v587
    %589 = vmatmul.f32.gmra.mxu0 %v538
    %v590 = vpop.f32.mrf.mxu0
    %v591 = vadd.f32 0.0, %v590
    %592 = vdwg.mxu0
    %v593 = vmul.f32 %v558, %v390
    %v594 = vmul.f32 %v561, %v391
    %v595 = vmul.f32 %v564, %v392
    %v596 = vmul.f32 %v567, %v393
    %v597 = vmul.f32 %v570, %v394
    %v598 = vmul.f32 %v573, %v395
    %v599 = vmul.f32 %v576, %v396
    %v600 = vmul.f32 %v579, %v397
    %v601 = vmul.f32 %v582, %v398
    %v602 = vmul.f32 %v585, %v399
    %v603 = vmul.f32 %v588, %v400
    %v604 = vmul.f32 %v591, %v401
    %v605 = vadd.f32 %v593, %v402
    %v606 = vadd.f32 %v594, %v403
    %v607 = vadd.f32 %v595, %v404
    %v608 = vadd.f32 %v596, %v405
    %v609 = vadd.f32 %v597, %v406
    %v610 = vadd.f32 %v598, %v407
    %v611 = vadd.f32 %v599, %v408
    %v612 = vadd.f32 %v600, %v409
    %v613 = vadd.f32 %v601, %v410
    %v614 = vadd.f32 %v602, %v411
    %v615 = vadd.f32 %v603, %v412
    %v616 = vadd.f32 %v604, %v413
    %vm617 = vcmp.ge.f32.partialorder %v605, 0.0
    %vm618 = vcmp.ge.f32.partialorder %v606, 0.0
    %vm619 = vcmp.ge.f32.partialorder %v607, 0.0
    %vm620 = vcmp.ge.f32.partialorder %v608, 0.0
    %vm621 = vcmp.ge.f32.partialorder %v609, 0.0
    %vm622 = vcmp.ge.f32.partialorder %v610, 0.0
    %vm623 = vcmp.ge.f32.partialorder %v611, 0.0
    %vm624 = vcmp.ge.f32.partialorder %v612, 0.0
    %vm625 = vcmp.ge.f32.partialorder %v613, 0.0
    %vm626 = vcmp.ge.f32.partialorder %v614, 0.0
    %vm627 = vcmp.ge.f32.partialorder %v615, 0.0
    %vm628 = vcmp.ge.f32.partialorder %v616, 0.0
    %v629 = vmul.f32 %v605, 0.1
    %v630 = vmul.f32 %v606, 0.1
    %v631 = vmul.f32 %v607, 0.1
    %v632 = vmul.f32 %v608, 0.1
    %v633 = vmul.f32 %v609, 0.1
    %v634 = vmul.f32 %v610, 0.1
    %v635 = vmul.f32 %v611, 0.1
    %v636 = vmul.f32 %v612, 0.1
    %v637 = vmul.f32 %v613, 0.1
    %v638 = vmul.f32 %v614, 0.1
    %v639 = vmul.f32 %v615, 0.1
    %v640 = vmul.f32 %v616, 0.1
    %v641 = vsel %vm617, %v605, %v629
    %v642 = vsel %vm618, %v606, %v630
    %v643 = vsel %vm619, %v607, %v631
    %v644 = vsel %vm620, %v608, %v632
    %v645 = vsel %vm621, %v609, %v633
    %v646 = vsel %vm622, %v610, %v634
    %v647 = vsel %vm623, %v611, %v635
    %v648 = vsel %vm624, %v612, %v636
    %v649 = vsel %vm625, %v613, %v637
    %v650 = vsel %vm626, %v614, %v638
    %v651 = vsel %vm627, %v615, %v639
    %v652 = vsel %vm628, %v616, %v640
    %s653 = scalar_lea.vmem %s5, 32
    %v654 = vld [vmem:[%s653] sm:$0xff]
    %v655 = vld [vmem:[%s653 + $0x8] sm:$0xff]
    %v656 = vld [vmem:[%s653 + $0x10] sm:$0xff]
    %v657 = vld [vmem:[%s653 + $0x18] sm:$0xff]
    %s658 = scalar_lea.vmem %s6, 96
    %v659 = vld [vmem:[%s658] sm:$0xff]
    %v660 = vld [vmem:[%s658 + $0x8] sm:$0xff]
    %v661 = vld [vmem:[%s658 + $0x10] sm:$0xff]
    %v662 = vld [vmem:[%s658 + $0x18] sm:$0xff]
    %v663 = vld [vmem:[%s658 + $0x20] sm:$0xff]
    %v664 = vld [vmem:[%s658 + $0x28] sm:$0xff]
    %v665 = vld [vmem:[%s658 + $0x30] sm:$0xff]
    %v666 = vld [vmem:[%s658 + $0x38] sm:$0xff]
    %v667 = vld [vmem:[%s658 + $0x40] sm:$0xff]
    %v668 = vld [vmem:[%s658 + $0x48] sm:$0xff]
    %v669 = vld [vmem:[%s658 + $0x50] sm:$0xff]
    %v670 = vld [vmem:[%s658 + $0x58] sm:$0xff]
    %s671 = scalar_lea.vmem %s7, 96
    %v672 = vld [vmem:[%s671] sm:$0xff]
    %v673 = vld [vmem:[%s671 + $0x8] sm:$0xff]
    %v674 = vld [vmem:[%s671 + $0x10] sm:$0xff]
    %v675 = vld [vmem:[%s671 + $0x18] sm:$0xff]
    %v676 = vld [vmem:[%s671 + $0x20] sm:$0xff]
    %v677 = vld [vmem:[%s671 + $0x28] sm:$0xff]
    %v678 = vld [vmem:[%s671 + $0x30] sm:$0xff]
    %v679 = vld [vmem:[%s671 + $0x38] sm:$0xff]
    %v680 = vld [vmem:[%s671 + $0x40] sm:$0xff]
    %v681 = vld [vmem:[%s671 + $0x48] sm:$0xff]
    %v682 = vld [vmem:[%s671 + $0x50] sm:$0xff]
    %v683 = vld [vmem:[%s671 + $0x58] sm:$0xff]
    %s684 = scalar_lea.vmem %s8, 96
    %v685 = vld [vmem:[%s684] sm:$0xff]
    %v686 = vld [vmem:[%s684 + $0x8] sm:$0xff]
    %v687 = vld [vmem:[%s684 + $0x10] sm:$0xff]
    %v688 = vld [vmem:[%s684 + $0x18] sm:$0xff]
    %v689 = vld [vmem:[%s684 + $0x20] sm:$0xff]
    %v690 = vld [vmem:[%s684 + $0x28] sm:$0xff]
    %v691 = vld [vmem:[%s684 + $0x30] sm:$0xff]
    %v692 = vld [vmem:[%s684 + $0x38] sm:$0xff]
    %v693 = vld [vmem:[%s684 + $0x40] sm:$0xff]
    %v694 = vld [vmem:[%s684 + $0x48] sm:$0xff]
    %v695 = vld [vmem:[%s684 + $0x50] sm:$0xff]
    %v696 = vld [vmem:[%s684 + $0x58] sm:$0xff]
    %v698 = vsel %vm414, %v641, 0
    %v701 = vsel %vm414, %v642, 0
    %v704 = vsel %vm414, %v643, 0
    %v707 = vsel %vm414, %v644, 0
    %v710 = vsel %vm414, %v645, 0
    %v713 = vsel %vm414, %v646, 0
    %v716 = vsel %vm414, %v647, 0
    %v719 = vsel %vm414, %v648, 0
    %v722 = vsel %vm414, %v649, 0
    %v725 = vsel %vm414, %v650, 0
    %v728 = vsel %vm414, %v651, 0
    %v731 = vsel %vm414, %v652, 0
    %733 = vmatpush.msra.mxu0 0.0
    %734 = vmatpush.msra.mxu0 0.0
    %735 = vmatpush.msra.mxu0 0.0
    %736 = vmatpush.msra.mxu0 0.0
    %737 = vmatpush.msra.mxu0 0.0
    %738 = vmatpush.msra.mxu0 0.0
    %739 = vmatpush.msra.mxu0 0.0
    %740 = vmatpush.msra.mxu0 0.0
    %741 = vmatpush.msra.mxu0 0.0
    %742 = vmatpush.msra.mxu0 0.0
    %743 = vmatpush.msra.mxu0 0.0
    %744 = vmatpush.msra.mxu0 0.0
    %745 = vmatpush.msra.mxu0 %v657
    %746 = vmatpush.msra.mxu0 %v656
    %747 = vmatpush.msra.mxu0 %v655
    %748 = vmatpush.msra.mxu0 %v654
    %749 = vmatmul.f32.gmra.mxu0 %v698
    %v750 = vpop.f32.mrf.mxu0
    %v751 = vadd.f32 0.0, %v750
    %752 = vmatmul.f32.gmra.mxu0 %v701
    %v753 = vpop.f32.mrf.mxu0
    %v754 = vadd.f32 0.0, %v753
    %755 = vmatmul.f32.gmra.mxu0 %v704
    %v756 = vpop.f32.mrf.mxu0
    %v757 = vadd.f32 0.0, %v756
    %758 = vmatmul.f32.gmra.mxu0 %v707
    %v759 = vpop.f32.mrf.mxu0
    %v760 = vadd.f32 0.0, %v759
    %761 = vmatmul.f32.gmra.mxu0 %v710
    %v762 = vpop.f32.mrf.mxu0
    %v763 = vadd.f32 0.0, %v762
    %764 = vmatmul.f32.gmra.mxu0 %v713
    %v765 = vpop.f32.mrf.mxu0
    %v766 = vadd.f32 0.0, %v765
    %767 = vmatmul.f32.gmra.mxu0 %v716
    %v768 = vpop.f32.mrf.mxu0
    %v769 = vadd.f32 0.0, %v768
    %770 = vmatmul.f32.gmra.mxu0 %v719
    %v771 = vpop.f32.mrf.mxu0
    %v772 = vadd.f32 0.0, %v771
    %773 = vmatmul.f32.gmra.mxu0 %v722
    %v774 = vpop.f32.mrf.mxu0
    %v775 = vadd.f32 0.0, %v774
    %776 = vmatmul.f32.gmra.mxu0 %v725
    %v777 = vpop.f32.mrf.mxu0
    %v778 = vadd.f32 0.0, %v777
    %779 = vmatmul.f32.gmra.mxu0 %v728
    %v780 = vpop.f32.mrf.mxu0
    %v781 = vadd.f32 0.0, %v780
    %782 = vmatmul.f32.gmra.mxu0 %v731
    %v783 = vpop.f32.mrf.mxu0
    %v784 = vadd.f32 0.0, %v783
    %785 = vdwg.mxu0
    %v787 = vsel %vm224, %v659, 0
    %v790 = vsel %vm224, %v660, 0
    %v793 = vsel %vm224, %v661, 0
    %v796 = vsel %vm224, %v662, 0
    %v799 = vsel %vm224, %v663, 0
    %v802 = vsel %vm224, %v664, 0
    %v805 = vsel %vm224, %v665, 0
    %v808 = vsel %vm224, %v666, 0
    %v811 = vsel %vm224, %v667, 0
    %v814 = vsel %vm224, %v668, 0
    %v817 = vsel %vm224, %v669, 0
    %v820 = vsel %vm224, %v670, 0
    %822 = vmatpush.msra.mxu0 0.0
    %823 = vmatpush.msra.mxu0 0.0
    %824 = vmatpush.msra.mxu0 0.0
    %825 = vmatpush.msra.mxu0 0.0
    %826 = vmatpush.msra.mxu0 %v784
    %827 = vmatpush.msra.mxu0 %v781
    %828 = vmatpush.msra.mxu0 %v778
    %829 = vmatpush.msra.mxu0 %v775
    %830 = vmatpush.msra.mxu0 %v772
    %831 = vmatpush.msra.mxu0 %v769
    %832 = vmatpush.msra.mxu0 %v766
    %833 = vmatpush.msra.mxu0 %v763
    %834 = vmatpush.msra.mxu0 %v760
    %835 = vmatpush.msra.mxu0 %v757
    %836 = vmatpush.msra.mxu0 %v754
    %837 = vmatpush.msra.mxu0 %v751
    %838 = vmatmul.f32.gmra.mxu0 %v787
    %v839 = vpop.f32.mrf.mxu0
    %v840 = vadd.f32 0.0, %v839
    %841 = vmatmul.f32.gmra.mxu0 %v790
    %v842 = vpop.f32.mrf.mxu0
    %v843 = vadd.f32 0.0, %v842
    %844 = vmatmul.f32.gmra.mxu0 %v793
    %v845 = vpop.f32.mrf.mxu0
    %v846 = vadd.f32 0.0, %v845
    %847 = vmatmul.f32.gmra.mxu0 %v796
    %v848 = vpop.f32.mrf.mxu0
    %v849 = vadd.f32 0.0, %v848
    %850 = vmatmul.f32.gmra.mxu0 %v799
    %v851 = vpop.f32.mrf.mxu0
    %v852 = vadd.f32 0.0, %v851
    %853 = vmatmul.f32.gmra.mxu0 %v802
    %v854 = vpop.f32.mrf.mxu0
    %v855 = vadd.f32 0.0, %v854
    %856 = vmatmul.f32.gmra.mxu0 %v805
    %v857 = vpop.f32.mrf.mxu0
    %v858 = vadd.f32 0.0, %v857
    %859 = vmatmul.f32.gmra.mxu0 %v808
    %v860 = vpop.f32.mrf.mxu0
    %v861 = vadd.f32 0.0, %v860
    %862 = vmatmul.f32.gmra.mxu0 %v811
    %v863 = vpop.f32.mrf.mxu0
    %v864 = vadd.f32 0.0, %v863
    %865 = vmatmul.f32.gmra.mxu0 %v814
    %v866 = vpop.f32.mrf.mxu0
    %v867 = vadd.f32 0.0, %v866
    %868 = vmatmul.f32.gmra.mxu0 %v817
    %v869 = vpop.f32.mrf.mxu0
    %v870 = vadd.f32 0.0, %v869
    %871 = vmatmul.f32.gmra.mxu0 %v820
    %v872 = vpop.f32.mrf.mxu0
    %v873 = vadd.f32 0.0, %v872
    %874 = vdwg.mxu0
    %v875 = vmul.f32 %v840, %v672
    %v876 = vmul.f32 %v843, %v673
    %v877 = vmul.f32 %v846, %v674
    %v878 = vmul.f32 %v849, %v675
    %v879 = vmul.f32 %v852, %v676
    %v880 = vmul.f32 %v855, %v677
    %v881 = vmul.f32 %v858, %v678
    %v882 = vmul.f32 %v861, %v679
    %v883 = vmul.f32 %v864, %v680
    %v884 = vmul.f32 %v867, %v681
    %v885 = vmul.f32 %v870, %v682
    %v886 = vmul.f32 %v873, %v683
    %v887 = vadd.f32 %v875, %v685
    %v888 = vadd.f32 %v876, %v686
    %v889 = vadd.f32 %v877, %v687
    %v890 = vadd.f32 %v878, %v688
    %v891 = vadd.f32 %v879, %v689
    %v892 = vadd.f32 %v880, %v690
    %v893 = vadd.f32 %v881, %v691
    %v894 = vadd.f32 %v882, %v692
    %v895 = vadd.f32 %v883, %v693
    %v896 = vadd.f32 %v884, %v694
    %v897 = vadd.f32 %v885, %v695
    %v898 = vadd.f32 %v886, %v696
    %vm899 = vcmp.ge.f32.partialorder %v887, 0.0
    %vm900 = vcmp.ge.f32.partialorder %v888, 0.0
    %vm901 = vcmp.ge.f32.partialorder %v889, 0.0
    %vm902 = vcmp.ge.f32.partialorder %v890, 0.0
    %vm903 = vcmp.ge.f32.partialorder %v891, 0.0
    %vm904 = vcmp.ge.f32.partialorder %v892, 0.0
    %vm905 = vcmp.ge.f32.partialorder %v893, 0.0
    %vm906 = vcmp.ge.f32.partialorder %v894, 0.0
    %vm907 = vcmp.ge.f32.partialorder %v895, 0.0
    %vm908 = vcmp.ge.f32.partialorder %v896, 0.0
    %vm909 = vcmp.ge.f32.partialorder %v897, 0.0
    %vm910 = vcmp.ge.f32.partialorder %v898, 0.0
    %v911 = vmul.f32 %v887, 0.1
    %v912 = vmul.f32 %v888, 0.1
    %v913 = vmul.f32 %v889, 0.1
    %v914 = vmul.f32 %v890, 0.1
    %v915 = vmul.f32 %v891, 0.1
    %v916 = vmul.f32 %v892, 0.1
    %v917 = vmul.f32 %v893, 0.1
    %v918 = vmul.f32 %v894, 0.1
    %v919 = vmul.f32 %v895, 0.1
    %v920 = vmul.f32 %v896, 0.1
    %v921 = vmul.f32 %v897, 0.1
    %v922 = vmul.f32 %v898, 0.1
    %v923 = vsel %vm899, %v887, %v911
    %v924 = vsel %vm900, %v888, %v912
    %v925 = vsel %vm901, %v889, %v913
    %v926 = vsel %vm902, %v890, %v914
    %v927 = vsel %vm903, %v891, %v915
    %v928 = vsel %vm904, %v892, %v916
    %v929 = vsel %vm905, %v893, %v917
    %v930 = vsel %vm906, %v894, %v918
    %v931 = vsel %vm907, %v895, %v919
    %v932 = vsel %vm908, %v896, %v920
    %v933 = vsel %vm909, %v897, %v921
    %v934 = vsel %vm910, %v898, %v922
    %v935 = vadd.f32 %v923, %v362
    %v936 = vadd.f32 %v924, %v363
    %v937 = vadd.f32 %v925, %v364
    %v938 = vadd.f32 %v926, %v365
    %v939 = vadd.f32 %v927, %v366
    %v940 = vadd.f32 %v928, %v367
    %v941 = vadd.f32 %v929, %v368
    %v942 = vadd.f32 %v930, %v369
    %v943 = vadd.f32 %v931, %v370
    %v944 = vadd.f32 %v932, %v371
    %v945 = vadd.f32 %v933, %v372
    %v946 = vadd.f32 %v934, %v373
    %s947 = scalar_lea.vmem %s5, 64
    %v948 = vld [vmem:[%s947] sm:$0xff]
    %v949 = vld [vmem:[%s947 + $0x8] sm:$0xff]
    %v950 = vld [vmem:[%s947 + $0x10] sm:$0xff]
    %v951 = vld [vmem:[%s947 + $0x18] sm:$0xff]
    %s952 = scalar_lea.vmem %s6, 192
    %v953 = vld [vmem:[%s952] sm:$0xff]
    %v954 = vld [vmem:[%s952 + $0x8] sm:$0xff]
    %v955 = vld [vmem:[%s952 + $0x10] sm:$0xff]
    %v956 = vld [vmem:[%s952 + $0x18] sm:$0xff]
    %v957 = vld [vmem:[%s952 + $0x20] sm:$0xff]
    %v958 = vld [vmem:[%s952 + $0x28] sm:$0xff]
    %v959 = vld [vmem:[%s952 + $0x30] sm:$0xff]
    %v960 = vld [vmem:[%s952 + $0x38] sm:$0xff]
    %v961 = vld [vmem:[%s952 + $0x40] sm:$0xff]
    %v962 = vld [vmem:[%s952 + $0x48] sm:$0xff]
    %v963 = vld [vmem:[%s952 + $0x50] sm:$0xff]
    %v964 = vld [vmem:[%s952 + $0x58] sm:$0xff]
    %s965 = scalar_lea.vmem %s7, 192
    %v966 = vld [vmem:[%s965] sm:$0xff]
    %v967 = vld [vmem:[%s965 + $0x8] sm:$0xff]
    %v968 = vld [vmem:[%s965 + $0x10] sm:$0xff]
    %v969 = vld [vmem:[%s965 + $0x18] sm:$0xff]
    %v970 = vld [vmem:[%s965 + $0x20] sm:$0xff]
    %v971 = vld [vmem:[%s965 + $0x28] sm:$0xff]
    %v972 = vld [vmem:[%s965 + $0x30] sm:$0xff]
    %v973 = vld [vmem:[%s965 + $0x38] sm:$0xff]
    %v974 = vld [vmem:[%s965 + $0x40] sm:$0xff]
    %v975 = vld [vmem:[%s965 + $0x48] sm:$0xff]
    %v976 = vld [vmem:[%s965 + $0x50] sm:$0xff]
    %v977 = vld [vmem:[%s965 + $0x58] sm:$0xff]
    %s978 = scalar_lea.vmem %s8, 192
    %v979 = vld [vmem:[%s978] sm:$0xff]
    %v980 = vld [vmem:[%s978 + $0x8] sm:$0xff]
    %v981 = vld [vmem:[%s978 + $0x10] sm:$0xff]
    %v982 = vld [vmem:[%s978 + $0x18] sm:$0xff]
    %v983 = vld [vmem:[%s978 + $0x20] sm:$0xff]
    %v984 = vld [vmem:[%s978 + $0x28] sm:$0xff]
    %v985 = vld [vmem:[%s978 + $0x30] sm:$0xff]
    %v986 = vld [vmem:[%s978 + $0x38] sm:$0xff]
    %v987 = vld [vmem:[%s978 + $0x40] sm:$0xff]
    %v988 = vld [vmem:[%s978 + $0x48] sm:$0xff]
    %v989 = vld [vmem:[%s978 + $0x50] sm:$0xff]
    %v990 = vld [vmem:[%s978 + $0x58] sm:$0xff]
    %v992 = vsel %vm414, %v935, 0
    %v995 = vsel %vm414, %v936, 0
    %v998 = vsel %vm414, %v937, 0
    %v1001 = vsel %vm414, %v938, 0
    %v1004 = vsel %vm414, %v939, 0
    %v1007 = vsel %vm414, %v940, 0
    %v1010 = vsel %vm414, %v941, 0
    %v1013 = vsel %vm414, %v942, 0
    %v1016 = vsel %vm414, %v943, 0
    %v1019 = vsel %vm414, %v944, 0
    %v1022 = vsel %vm414, %v945, 0
    %v1025 = vsel %vm414, %v946, 0
    %1027 = vmatpush.msra.mxu0 0.0
    %1028 = vmatpush.msra.mxu0 0.0
    %1029 = vmatpush.msra.mxu0 0.0
    %1030 = vmatpush.msra.mxu0 0.0
    %1031 = vmatpush.msra.mxu0 0.0
    %1032 = vmatpush.msra.mxu0 0.0
    %1033 = vmatpush.msra.mxu0 0.0
    %1034 = vmatpush.msra.mxu0 0.0
    %1035 = vmatpush.msra.mxu0 0.0
    %1036 = vmatpush.msra.mxu0 0.0
    %1037 = vmatpush.msra.mxu0 0.0
    %1038 = vmatpush.msra.mxu0 0.0
    %1039 = vmatpush.msra.mxu0 %v951
    %1040 = vmatpush.msra.mxu0 %v950
    %1041 = vmatpush.msra.mxu0 %v949
    %1042 = vmatpush.msra.mxu0 %v948
    %1043 = vmatmul.f32.gmra.mxu0 %v992
    %v1044 = vpop.f32.mrf.mxu0
    %v1045 = vadd.f32 0.0, %v1044
    %1046 = vmatmul.f32.gmra.mxu0 %v995
    %v1047 = vpop.f32.mrf.mxu0
    %v1048 = vadd.f32 0.0, %v1047
    %1049 = vmatmul.f32.gmra.mxu0 %v998
    %v1050 = vpop.f32.mrf.mxu0
    %v1051 = vadd.f32 0.0, %v1050
    %1052 = vmatmul.f32.gmra.mxu0 %v1001
    %v1053 = vpop.f32.mrf.mxu0
    %v1054 = vadd.f32 0.0, %v1053
    %1055 = vmatmul.f32.gmra.mxu0 %v1004
    %v1056 = vpop.f32.mrf.mxu0
    %v1057 = vadd.f32 0.0, %v1056
    %1058 = vmatmul.f32.gmra.mxu0 %v1007
    %v1059 = vpop.f32.mrf.mxu0
    %v1060 = vadd.f32 0.0, %v1059
    %1061 = vmatmul.f32.gmra.mxu0 %v1010
    %v1062 = vpop.f32.mrf.mxu0
    %v1063 = vadd.f32 0.0, %v1062
    %1064 = vmatmul.f32.gmra.mxu0 %v1013
    %v1065 = vpop.f32.mrf.mxu0
    %v1066 = vadd.f32 0.0, %v1065
    %1067 = vmatmul.f32.gmra.mxu0 %v1016
    %v1068 = vpop.f32.mrf.mxu0
    %v1069 = vadd.f32 0.0, %v1068
    %1070 = vmatmul.f32.gmra.mxu0 %v1019
    %v1071 = vpop.f32.mrf.mxu0
    %v1072 = vadd.f32 0.0, %v1071
    %1073 = vmatmul.f32.gmra.mxu0 %v1022
    %v1074 = vpop.f32.mrf.mxu0
    %v1075 = vadd.f32 0.0, %v1074
    %1076 = vmatmul.f32.gmra.mxu0 %v1025
    %v1077 = vpop.f32.mrf.mxu0
    %v1078 = vadd.f32 0.0, %v1077
    %1079 = vdwg.mxu0
    %v1081 = vsel %vm224, %v953, 0
    %v1084 = vsel %vm224, %v954, 0
    %v1087 = vsel %vm224, %v955, 0
    %v1090 = vsel %vm224, %v956, 0
    %v1093 = vsel %vm224, %v957, 0
    %v1096 = vsel %vm224, %v958, 0
    %v1099 = vsel %vm224, %v959, 0
    %v1102 = vsel %vm224, %v960, 0
    %v1105 = vsel %vm224, %v961, 0
    %v1108 = vsel %vm224, %v962, 0
    %v1111 = vsel %vm224, %v963, 0
    %v1114 = vsel %vm224, %v964, 0
    %1116 = vmatpush.msra.mxu0 0.0
    %1117 = vmatpush.msra.mxu0 0.0
    %1118 = vmatpush.msra.mxu0 0.0
    %1119 = vmatpush.msra.mxu0 0.0
    %1120 = vmatpush.msra.mxu0 %v1078
    %1121 = vmatpush.msra.mxu0 %v1075
    %1122 = vmatpush.msra.mxu0 %v1072
    %1123 = vmatpush.msra.mxu0 %v1069
    %1124 = vmatpush.msra.mxu0 %v1066
    %1125 = vmatpush.msra.mxu0 %v1063
    %1126 = vmatpush.msra.mxu0 %v1060
    %1127 = vmatpush.msra.mxu0 %v1057
    %1128 = vmatpush.msra.mxu0 %v1054
    %1129 = vmatpush.msra.mxu0 %v1051
    %1130 = vmatpush.msra.mxu0 %v1048
    %1131 = vmatpush.msra.mxu0 %v1045
    %1132 = vmatmul.f32.gmra.mxu0 %v1081
    %v1133 = vpop.f32.mrf.mxu0
    %v1134 = vadd.f32 0.0, %v1133
    %1135 = vmatmul.f32.gmra.mxu0 %v1084
    %v1136 = vpop.f32.mrf.mxu0
    %v1137 = vadd.f32 0.0, %v1136
    %1138 = vmatmul.f32.gmra.mxu0 %v1087
    %v1139 = vpop.f32.mrf.mxu0
    %v1140 = vadd.f32 0.0, %v1139
    %1141 = vmatmul.f32.gmra.mxu0 %v1090
    %v1142 = vpop.f32.mrf.mxu0
    %v1143 = vadd.f32 0.0, %v1142
    %1144 = vmatmul.f32.gmra.mxu0 %v1093
    %v1145 = vpop.f32.mrf.mxu0
    %v1146 = vadd.f32 0.0, %v1145
    %1147 = vmatmul.f32.gmra.mxu0 %v1096
    %v1148 = vpop.f32.mrf.mxu0
    %v1149 = vadd.f32 0.0, %v1148
    %1150 = vmatmul.f32.gmra.mxu0 %v1099
    %v1151 = vpop.f32.mrf.mxu0
    %v1152 = vadd.f32 0.0, %v1151
    %1153 = vmatmul.f32.gmra.mxu0 %v1102
    %v1154 = vpop.f32.mrf.mxu0
    %v1155 = vadd.f32 0.0, %v1154
    %1156 = vmatmul.f32.gmra.mxu0 %v1105
    %v1157 = vpop.f32.mrf.mxu0
    %v1158 = vadd.f32 0.0, %v1157
    %1159 = vmatmul.f32.gmra.mxu0 %v1108
    %v1160 = vpop.f32.mrf.mxu0
    %v1161 = vadd.f32 0.0, %v1160
    %1162 = vmatmul.f32.gmra.mxu0 %v1111
    %v1163 = vpop.f32.mrf.mxu0
    %v1164 = vadd.f32 0.0, %v1163
    %1165 = vmatmul.f32.gmra.mxu0 %v1114
    %v1166 = vpop.f32.mrf.mxu0
    %v1167 = vadd.f32 0.0, %v1166
    %1168 = vdwg.mxu0
    %v1169 = vmul.f32 %v1134, %v966
    %v1170 = vmul.f32 %v1137, %v967
    %v1171 = vmul.f32 %v1140, %v968
    %v1172 = vmul.f32 %v1143, %v969
    %v1173 = vmul.f32 %v1146, %v970
    %v1174 = vmul.f32 %v1149, %v971
    %v1175 = vmul.f32 %v1152, %v972
    %v1176 = vmul.f32 %v1155, %v973
    %v1177 = vmul.f32 %v1158, %v974
    %v1178 = vmul.f32 %v1161, %v975
    %v1179 = vmul.f32 %v1164, %v976
    %v1180 = vmul.f32 %v1167, %v977
    %v1181 = vadd.f32 %v1169, %v979
    %v1182 = vadd.f32 %v1170, %v980
    %v1183 = vadd.f32 %v1171, %v981
    %v1184 = vadd.f32 %v1172, %v982
    %v1185 = vadd.f32 %v1173, %v983
    %v1186 = vadd.f32 %v1174, %v984
    %v1187 = vadd.f32 %v1175, %v985
    %v1188 = vadd.f32 %v1176, %v986
    %v1189 = vadd.f32 %v1177, %v987
    %v1190 = vadd.f32 %v1178, %v988
    %v1191 = vadd.f32 %v1179, %v989
    %v1192 = vadd.f32 %v1180, %v990
    %vm1193 = vcmp.ge.f32.partialorder %v1181, 0.0
    %vm1194 = vcmp.ge.f32.partialorder %v1182, 0.0
    %vm1195 = vcmp.ge.f32.partialorder %v1183, 0.0
    %vm1196 = vcmp.ge.f32.partialorder %v1184, 0.0
    %vm1197 = vcmp.ge.f32.partialorder %v1185, 0.0
    %vm1198 = vcmp.ge.f32.partialorder %v1186, 0.0
    %vm1199 = vcmp.ge.f32.partialorder %v1187, 0.0
    %vm1200 = vcmp.ge.f32.partialorder %v1188, 0.0
    %vm1201 = vcmp.ge.f32.partialorder %v1189, 0.0
    %vm1202 = vcmp.ge.f32.partialorder %v1190, 0.0
    %vm1203 = vcmp.ge.f32.partialorder %v1191, 0.0
    %vm1204 = vcmp.ge.f32.partialorder %v1192, 0.0
    %v1205 = vmul.f32 %v1181, 0.1
    %v1206 = vmul.f32 %v1182, 0.1
    %v1207 = vmul.f32 %v1183, 0.1
    %v1208 = vmul.f32 %v1184, 0.1
    %v1209 = vmul.f32 %v1185, 0.1
    %v1210 = vmul.f32 %v1186, 0.1
    %v1211 = vmul.f32 %v1187, 0.1
    %v1212 = vmul.f32 %v1188, 0.1
    %v1213 = vmul.f32 %v1189, 0.1
    %v1214 = vmul.f32 %v1190, 0.1
    %v1215 = vmul.f32 %v1191, 0.1
    %v1216 = vmul.f32 %v1192, 0.1
    %v1217 = vsel %vm1193, %v1181, %v1205
    %v1218 = vsel %vm1194, %v1182, %v1206
    %v1219 = vsel %vm1195, %v1183, %v1207
    %v1220 = vsel %vm1196, %v1184, %v1208
    %v1221 = vsel %vm1197, %v1185, %v1209
    %v1222 = vsel %vm1198, %v1186, %v1210
    %v1223 = vsel %vm1199, %v1187, %v1211
    %v1224 = vsel %vm1200, %v1188, %v1212
    %v1225 = vsel %vm1201, %v1189, %v1213
    %v1226 = vsel %vm1202, %v1190, %v1214
    %v1227 = vsel %vm1203, %v1191, %v1215
    %v1228 = vsel %vm1204, %v1192, %v1216
    %s1229 = scalar_lea.vmem %s5, 96
    %v1230 = vld [vmem:[%s1229] sm:$0xff]
    %v1231 = vld [vmem:[%s1229 + $0x8] sm:$0xff]
    %v1232 = vld [vmem:[%s1229 + $0x10] sm:$0xff]
    %v1233 = vld [vmem:[%s1229 + $0x18] sm:$0xff]
    %s1234 = scalar_lea.vmem %s6, 288
    %v1235 = vld [vmem:[%s1234] sm:$0xff]
    %v1236 = vld [vmem:[%s1234 + $0x8] sm:$0xff]
    %v1237 = vld [vmem:[%s1234 + $0x10] sm:$0xff]
    %v1238 = vld [vmem:[%s1234 + $0x18] sm:$0xff]
    %v1239 = vld [vmem:[%s1234 + $0x20] sm:$0xff]
    %v1240 = vld [vmem:[%s1234 + $0x28] sm:$0xff]
    %v1241 = vld [vmem:[%s1234 + $0x30] sm:$0xff]
    %v1242 = vld [vmem:[%s1234 + $0x38] sm:$0xff]
    %v1243 = vld [vmem:[%s1234 + $0x40] sm:$0xff]
    %v1244 = vld [vmem:[%s1234 + $0x48] sm:$0xff]
    %v1245 = vld [vmem:[%s1234 + $0x50] sm:$0xff]
    %v1246 = vld [vmem:[%s1234 + $0x58] sm:$0xff]
    %s1247 = scalar_lea.vmem %s7, 288
    %v1248 = vld [vmem:[%s1247] sm:$0xff]
    %v1249 = vld [vmem:[%s1247 + $0x8] sm:$0xff]
    %v1250 = vld [vmem:[%s1247 + $0x10] sm:$0xff]
    %v1251 = vld [vmem:[%s1247 + $0x18] sm:$0xff]
    %v1252 = vld [vmem:[%s1247 + $0x20] sm:$0xff]
    %v1253 = vld [vmem:[%s1247 + $0x28] sm:$0xff]
    %v1254 = vld [vmem:[%s1247 + $0x30] sm:$0xff]
    %v1255 = vld [vmem:[%s1247 + $0x38] sm:$0xff]
    %v1256 = vld [vmem:[%s1247 + $0x40] sm:$0xff]
    %v1257 = vld [vmem:[%s1247 + $0x48] sm:$0xff]
    %v1258 = vld [vmem:[%s1247 + $0x50] sm:$0xff]
    %v1259 = vld [vmem:[%s1247 + $0x58] sm:$0xff]
    %s1260 = scalar_lea.vmem %s8, 288
    %v1261 = vld [vmem:[%s1260] sm:$0xff]
    %v1262 = vld [vmem:[%s1260 + $0x8] sm:$0xff]
    %v1263 = vld [vmem:[%s1260 + $0x10] sm:$0xff]
    %v1264 = vld [vmem:[%s1260 + $0x18] sm:$0xff]
    %v1265 = vld [vmem:[%s1260 + $0x20] sm:$0xff]
    %v1266 = vld [vmem:[%s1260 + $0x28] sm:$0xff]
    %v1267 = vld [vmem:[%s1260 + $0x30] sm:$0xff]
    %v1268 = vld [vmem:[%s1260 + $0x38] sm:$0xff]
    %v1269 = vld [vmem:[%s1260 + $0x40] sm:$0xff]
    %v1270 = vld [vmem:[%s1260 + $0x48] sm:$0xff]
    %v1271 = vld [vmem:[%s1260 + $0x50] sm:$0xff]
    %v1272 = vld [vmem:[%s1260 + $0x58] sm:$0xff]
    %v1274 = vsel %vm414, %v1217, 0
    %v1277 = vsel %vm414, %v1218, 0
    %v1280 = vsel %vm414, %v1219, 0
    %v1283 = vsel %vm414, %v1220, 0
    %v1286 = vsel %vm414, %v1221, 0
    %v1289 = vsel %vm414, %v1222, 0
    %v1292 = vsel %vm414, %v1223, 0
    %v1295 = vsel %vm414, %v1224, 0
    %v1298 = vsel %vm414, %v1225, 0
    %v1301 = vsel %vm414, %v1226, 0
    %v1304 = vsel %vm414, %v1227, 0
    %v1307 = vsel %vm414, %v1228, 0
    %1309 = vmatpush.msra.mxu0 0.0
    %1310 = vmatpush.msra.mxu0 0.0
    %1311 = vmatpush.msra.mxu0 0.0
    %1312 = vmatpush.msra.mxu0 0.0
    %1313 = vmatpush.msra.mxu0 0.0
    %1314 = vmatpush.msra.mxu0 0.0
    %1315 = vmatpush.msra.mxu0 0.0
    %1316 = vmatpush.msra.mxu0 0.0
    %1317 = vmatpush.msra.mxu0 0.0
    %1318 = vmatpush.msra.mxu0 0.0
    %1319 = vmatpush.msra.mxu0 0.0
    %1320 = vmatpush.msra.mxu0 0.0
    %1321 = vmatpush.msra.mxu0 %v1233
    %1322 = vmatpush.msra.mxu0 %v1232
    %1323 = vmatpush.msra.mxu0 %v1231
    %1324 = vmatpush.msra.mxu0 %v1230
    %1325 = vmatmul.f32.gmra.mxu0 %v1274
    %v1326 = vpop.f32.mrf.mxu0
    %v1327 = vadd.f32 0.0, %v1326
    %1328 = vmatmul.f32.gmra.mxu0 %v1277
    %v1329 = vpop.f32.mrf.mxu0
    %v1330 = vadd.f32 0.0, %v1329
    %1331 = vmatmul.f32.gmra.mxu0 %v1280
    %v1332 = vpop.f32.mrf.mxu0
    %v1333 = vadd.f32 0.0, %v1332
    %1334 = vmatmul.f32.gmra.mxu0 %v1283
    %v1335 = vpop.f32.mrf.mxu0
    %v1336 = vadd.f32 0.0, %v1335
    %1337 = vmatmul.f32.gmra.mxu0 %v1286
    %v1338 = vpop.f32.mrf.mxu0
    %v1339 = vadd.f32 0.0, %v1338
    %1340 = vmatmul.f32.gmra.mxu0 %v1289
    %v1341 = vpop.f32.mrf.mxu0
    %v1342 = vadd.f32 0.0, %v1341
    %1343 = vmatmul.f32.gmra.mxu0 %v1292
    %v1344 = vpop.f32.mrf.mxu0
    %v1345 = vadd.f32 0.0, %v1344
    %1346 = vmatmul.f32.gmra.mxu0 %v1295
    %v1347 = vpop.f32.mrf.mxu0
    %v1348 = vadd.f32 0.0, %v1347
    %1349 = vmatmul.f32.gmra.mxu0 %v1298
    %v1350 = vpop.f32.mrf.mxu0
    %v1351 = vadd.f32 0.0, %v1350
    %1352 = vmatmul.f32.gmra.mxu0 %v1301
    %v1353 = vpop.f32.mrf.mxu0
    %v1354 = vadd.f32 0.0, %v1353
    %1355 = vmatmul.f32.gmra.mxu0 %v1304
    %v1356 = vpop.f32.mrf.mxu0
    %v1357 = vadd.f32 0.0, %v1356
    %1358 = vmatmul.f32.gmra.mxu0 %v1307
    %v1359 = vpop.f32.mrf.mxu0
    %v1360 = vadd.f32 0.0, %v1359
    %1361 = vdwg.mxu0
    %v1363 = vsel %vm224, %v1235, 0
    %v1366 = vsel %vm224, %v1236, 0
    %v1369 = vsel %vm224, %v1237, 0
    %v1372 = vsel %vm224, %v1238, 0
    %v1375 = vsel %vm224, %v1239, 0
    %v1378 = vsel %vm224, %v1240, 0
    %v1381 = vsel %vm224, %v1241, 0
    %v1384 = vsel %vm224, %v1242, 0
    %v1387 = vsel %vm224, %v1243, 0
    %v1390 = vsel %vm224, %v1244, 0
    %v1393 = vsel %vm224, %v1245, 0
    %v1396 = vsel %vm224, %v1246, 0
    %1398 = vmatpush.msra.mxu0 0.0
    %1399 = vmatpush.msra.mxu0 0.0
    %1400 = vmatpush.msra.mxu0 0.0
    %1401 = vmatpush.msra.mxu0 0.0
    %1402 = vmatpush.msra.mxu0 %v1360
    %1403 = vmatpush.msra.mxu0 %v1357
    %1404 = vmatpush.msra.mxu0 %v1354
    %1405 = vmatpush.msra.mxu0 %v1351
    %1406 = vmatpush.msra.mxu0 %v1348
    %1407 = vmatpush.msra.mxu0 %v1345
    %1408 = vmatpush.msra.mxu0 %v1342
    %1409 = vmatpush.msra.mxu0 %v1339
    %1410 = vmatpush.msra.mxu0 %v1336
    %1411 = vmatpush.msra.mxu0 %v1333
    %1412 = vmatpush.msra.mxu0 %v1330
    %1413 = vmatpush.msra.mxu0 %v1327
    %1414 = vmatmul.f32.gmra.mxu0 %v1363
    %v1415 = vpop.f32.mrf.mxu0
    %v1416 = vadd.f32 0.0, %v1415
    %1417 = vmatmul.f32.gmra.mxu0 %v1366
    %v1418 = vpop.f32.mrf.mxu0
    %v1419 = vadd.f32 0.0, %v1418
    %1420 = vmatmul.f32.gmra.mxu0 %v1369
    %v1421 = vpop.f32.mrf.mxu0
    %v1422 = vadd.f32 0.0, %v1421
    %1423 = vmatmul.f32.gmra.mxu0 %v1372
    %v1424 = vpop.f32.mrf.mxu0
    %v1425 = vadd.f32 0.0, %v1424
    %1426 = vmatmul.f32.gmra.mxu0 %v1375
    %v1427 = vpop.f32.mrf.mxu0
    %v1428 = vadd.f32 0.0, %v1427
    %1429 = vmatmul.f32.gmra.mxu0 %v1378
    %v1430 = vpop.f32.mrf.mxu0
    %v1431 = vadd.f32 0.0, %v1430
    %1432 = vmatmul.f32.gmra.mxu0 %v1381
    %v1433 = vpop.f32.mrf.mxu0
    %v1434 = vadd.f32 0.0, %v1433
    %1435 = vmatmul.f32.gmra.mxu0 %v1384
    %v1436 = vpop.f32.mrf.mxu0
    %v1437 = vadd.f32 0.0, %v1436
    %1438 = vmatmul.f32.gmra.mxu0 %v1387
    %v1439 = vpop.f32.mrf.mxu0
    %v1440 = vadd.f32 0.0, %v1439
    %1441 = vmatmul.f32.gmra.mxu0 %v1390
    %v1442 = vpop.f32.mrf.mxu0
    %v1443 = vadd.f32 0.0, %v1442
    %1444 = vmatmul.f32.gmra.mxu0 %v1393
    %v1445 = vpop.f32.mrf.mxu0
    %v1446 = vadd.f32 0.0, %v1445
    %1447 = vmatmul.f32.gmra.mxu0 %v1396
    %v1448 = vpop.f32.mrf.mxu0
    %v1449 = vadd.f32 0.0, %v1448
    %1450 = vdwg.mxu0
    %v1451 = vmul.f32 %v1416, %v1248
    %v1452 = vmul.f32 %v1419, %v1249
    %v1453 = vmul.f32 %v1422, %v1250
    %v1454 = vmul.f32 %v1425, %v1251
    %v1455 = vmul.f32 %v1428, %v1252
    %v1456 = vmul.f32 %v1431, %v1253
    %v1457 = vmul.f32 %v1434, %v1254
    %v1458 = vmul.f32 %v1437, %v1255
    %v1459 = vmul.f32 %v1440, %v1256
    %v1460 = vmul.f32 %v1443, %v1257
    %v1461 = vmul.f32 %v1446, %v1258
    %v1462 = vmul.f32 %v1449, %v1259
    %v1463 = vadd.f32 %v1451, %v1261
    %v1464 = vadd.f32 %v1452, %v1262
    %v1465 = vadd.f32 %v1453, %v1263
    %v1466 = vadd.f32 %v1454, %v1264
    %v1467 = vadd.f32 %v1455, %v1265
    %v1468 = vadd.f32 %v1456, %v1266
    %v1469 = vadd.f32 %v1457, %v1267
    %v1470 = vadd.f32 %v1458, %v1268
    %v1471 = vadd.f32 %v1459, %v1269
    %v1472 = vadd.f32 %v1460, %v1270
    %v1473 = vadd.f32 %v1461, %v1271
    %v1474 = vadd.f32 %v1462, %v1272
    %vm1475 = vcmp.ge.f32.partialorder %v1463, 0.0
    %vm1476 = vcmp.ge.f32.partialorder %v1464, 0.0
    %vm1477 = vcmp.ge.f32.partialorder %v1465, 0.0
    %vm1478 = vcmp.ge.f32.partialorder %v1466, 0.0
    %vm1479 = vcmp.ge.f32.partialorder %v1467, 0.0
    %vm1480 = vcmp.ge.f32.partialorder %v1468, 0.0
    %vm1481 = vcmp.ge.f32.partialorder %v1469, 0.0
    %vm1482 = vcmp.ge.f32.partialorder %v1470, 0.0
    %vm1483 = vcmp.ge.f32.partialorder %v1471, 0.0
    %vm1484 = vcmp.ge.f32.partialorder %v1472, 0.0
    %vm1485 = vcmp.ge.f32.partialorder %v1473, 0.0
    %vm1486 = vcmp.ge.f32.partialorder %v1474, 0.0
    %v1487 = vmul.f32 %v1463, 0.1
    %v1488 = vmul.f32 %v1464, 0.1
    %v1489 = vmul.f32 %v1465, 0.1
    %v1490 = vmul.f32 %v1466, 0.1
    %v1491 = vmul.f32 %v1467, 0.1
    %v1492 = vmul.f32 %v1468, 0.1
    %v1493 = vmul.f32 %v1469, 0.1
    %v1494 = vmul.f32 %v1470, 0.1
    %v1495 = vmul.f32 %v1471, 0.1
    %v1496 = vmul.f32 %v1472, 0.1
    %v1497 = vmul.f32 %v1473, 0.1
    %v1498 = vmul.f32 %v1474, 0.1
    %v1499 = vsel %vm1475, %v1463, %v1487
    %v1500 = vsel %vm1476, %v1464, %v1488
    %v1501 = vsel %vm1477, %v1465, %v1489
    %v1502 = vsel %vm1478, %v1466, %v1490
    %v1503 = vsel %vm1479, %v1467, %v1491
    %v1504 = vsel %vm1480, %v1468, %v1492
    %v1505 = vsel %vm1481, %v1469, %v1493
    %v1506 = vsel %vm1482, %v1470, %v1494
    %v1507 = vsel %vm1483, %v1471, %v1495
    %v1508 = vsel %vm1484, %v1472, %v1496
    %v1509 = vsel %vm1485, %v1473, %v1497
    %v1510 = vsel %vm1486, %v1474, %v1498
    %v1511 = vadd.f32 %v1499, %v935
    %v1512 = vadd.f32 %v1500, %v936
    %v1513 = vadd.f32 %v1501, %v937
    %v1514 = vadd.f32 %v1502, %v938
    %v1515 = vadd.f32 %v1503, %v939
    %v1516 = vadd.f32 %v1504, %v940
    %v1517 = vadd.f32 %v1505, %v941
    %v1518 = vadd.f32 %v1506, %v942
    %v1519 = vadd.f32 %v1507, %v943
    %v1520 = vadd.f32 %v1508, %v944
    %v1521 = vadd.f32 %v1509, %v945
    %v1522 = vadd.f32 %v1510, %v946
    %v1523 = vld [vmem:[%s9] sm:$0xff]
    %v1524 = vld [vmem:[%s9 + $0x8] sm:$0xff]
    %v1525 = vld [vmem:[%s9 + $0x10] sm:$0xff]
    %v1526 = vld [vmem:[%s9 + $0x18] sm:$0xff]
    %v1527 = vld [vmem:[%s10] sm:$0xff]
    %v1528 = vld [vmem:[%s10 + $0x8] sm:$0xff]
    %v1529 = vld [vmem:[%s10 + $0x10] sm:$0xff]
    %v1530 = vld [vmem:[%s10 + $0x18] sm:$0xff]
    %v1531 = vld [vmem:[%s10 + $0x20] sm:$0xff]
    %v1532 = vld [vmem:[%s10 + $0x28] sm:$0xff]
    %v1533 = vld [vmem:[%s11] sm:$0xff]
    %v1534 = vld [vmem:[%s11 + $0x8] sm:$0xff]
    %v1535 = vld [vmem:[%s11 + $0x10] sm:$0xff]
    %v1536 = vld [vmem:[%s11 + $0x18] sm:$0xff]
    %v1537 = vld [vmem:[%s11 + $0x20] sm:$0xff]
    %v1538 = vld [vmem:[%s11 + $0x28] sm:$0xff]
    %v1539 = vld [vmem:[%s12] sm:$0xff]
    %v1540 = vld [vmem:[%s12 + $0x8] sm:$0xff]
    %v1541 = vld [vmem:[%s12 + $0x10] sm:$0xff]
    %v1542 = vld [vmem:[%s12 + $0x18] sm:$0xff]
    %v1543 = vld [vmem:[%s12 + $0x20] sm:$0xff]
    %v1544 = vld [vmem:[%s12 + $0x28] sm:$0xff]
    %v1546 = vsel %vm414, %v1511, 0
    %v1549 = vsel %vm414, %v1512, 0
    %v1552 = vsel %vm414, %v1513, 0
    %v1555 = vsel %vm414, %v1514, 0
    %v1558 = vsel %vm414, %v1515, 0
    %v1561 = vsel %vm414, %v1516, 0
    %v1564 = vsel %vm414, %v1517, 0
    %v1567 = vsel %vm414, %v1518, 0
    %v1570 = vsel %vm414, %v1519, 0
    %v1573 = vsel %vm414, %v1520, 0
    %v1576 = vsel %vm414, %v1521, 0
    %v1579 = vsel %vm414, %v1522, 0
    %1581 = vmatpush.msra.mxu0 0.0
    %1582 = vmatpush.msra.mxu0 0.0
    %1583 = vmatpush.msra.mxu0 0.0
    %1584 = vmatpush.msra.mxu0 0.0
    %1585 = vmatpush.msra.mxu0 0.0
    %1586 = vmatpush.msra.mxu0 0.0
    %1587 = vmatpush.msra.mxu0 0.0
    %1588 = vmatpush.msra.mxu0 0.0
    %1589 = vmatpush.msra.mxu0 0.0
    %1590 = vmatpush.msra.mxu0 0.0
    %1591 = vmatpush.msra.mxu0 0.0
    %1592 = vmatpush.msra.mxu0 0.0
    %1593 = vmatpush.msra.mxu0 %v1526
    %1594 = vmatpush.msra.mxu0 %v1525
    %1595 = vmatpush.msra.mxu0 %v1524
    %1596 = vmatpush.msra.mxu0 %v1523
    %1597 = vmatmul.f32.gmra.mxu0 %v1546
    %v1598 = vpop.f32.mrf.mxu0
    %v1599 = vadd.f32 0.0, %v1598
    %1600 = vmatmul.f32.gmra.mxu0 %v1549
    %v1601 = vpop.f32.mrf.mxu0
    %v1602 = vadd.f32 0.0, %v1601
    %1603 = vmatmul.f32.gmra.mxu0 %v1552
    %v1604 = vpop.f32.mrf.mxu0
    %v1605 = vadd.f32 0.0, %v1604
    %1606 = vmatmul.f32.gmra.mxu0 %v1555
    %v1607 = vpop.f32.mrf.mxu0
    %v1608 = vadd.f32 0.0, %v1607
    %1609 = vmatmul.f32.gmra.mxu0 %v1558
    %v1610 = vpop.f32.mrf.mxu0
    %v1611 = vadd.f32 0.0, %v1610
    %1612 = vmatmul.f32.gmra.mxu0 %v1561
    %v1613 = vpop.f32.mrf.mxu0
    %v1614 = vadd.f32 0.0, %v1613
    %1615 = vmatmul.f32.gmra.mxu0 %v1564
    %v1616 = vpop.f32.mrf.mxu0
    %v1617 = vadd.f32 0.0, %v1616
    %1618 = vmatmul.f32.gmra.mxu0 %v1567
    %v1619 = vpop.f32.mrf.mxu0
    %v1620 = vadd.f32 0.0, %v1619
    %1621 = vmatmul.f32.gmra.mxu0 %v1570
    %v1622 = vpop.f32.mrf.mxu0
    %v1623 = vadd.f32 0.0, %v1622
    %1624 = vmatmul.f32.gmra.mxu0 %v1573
    %v1625 = vpop.f32.mrf.mxu0
    %v1626 = vadd.f32 0.0, %v1625
    %1627 = vmatmul.f32.gmra.mxu0 %v1576
    %v1628 = vpop.f32.mrf.mxu0
    %v1629 = vadd.f32 0.0, %v1628
    %1630 = vmatmul.f32.gmra.mxu0 %v1579
    %v1631 = vpop.f32.mrf.mxu0
    %v1632 = vadd.f32 0.0, %v1631
    %1633 = vdwg.mxu0
    %v1635 = vsel %vm224, %v1527, 0
    %v1638 = vsel %vm224, %v1528, 0
    %v1641 = vsel %vm224, %v1529, 0
    %v1644 = vsel %vm224, %v1530, 0
    %v1647 = vsel %vm224, %v1531, 0
    %v1650 = vsel %vm224, %v1532, 0
    %1652 = vmatpush.msra.mxu0 0.0
    %1653 = vmatpush.msra.mxu0 0.0
    %1654 = vmatpush.msra.mxu0 0.0
    %1655 = vmatpush.msra.mxu0 0.0
    %1656 = vmatpush.msra.mxu0 %v1632
    %1657 = vmatpush.msra.mxu0 %v1629
    %1658 = vmatpush.msra.mxu0 %v1626
    %1659 = vmatpush.msra.mxu0 %v1623
    %1660 = vmatpush.msra.mxu0 %v1620
    %1661 = vmatpush.msra.mxu0 %v1617
    %1662 = vmatpush.msra.mxu0 %v1614
    %1663 = vmatpush.msra.mxu0 %v1611
    %1664 = vmatpush.msra.mxu0 %v1608
    %1665 = vmatpush.msra.mxu0 %v1605
    %1666 = vmatpush.msra.mxu0 %v1602
    %1667 = vmatpush.msra.mxu0 %v1599
    %1668 = vmatmul.f32.gmra.mxu0 %v1635
    %v1669 = vpop.f32.mrf.mxu0
    %v1670 = vadd.f32 0.0, %v1669
    %1671 = vmatmul.f32.gmra.mxu0 %v1638
    %v1672 = vpop.f32.mrf.mxu0
    %v1673 = vadd.f32 0.0, %v1672
    %1674 = vmatmul.f32.gmra.mxu0 %v1641
    %v1675 = vpop.f32.mrf.mxu0
    %v1676 = vadd.f32 0.0, %v1675
    %1677 = vmatmul.f32.gmra.mxu0 %v1644
    %v1678 = vpop.f32.mrf.mxu0
    %v1679 = vadd.f32 0.0, %v1678
    %1680 = vmatmul.f32.gmra.mxu0 %v1647
    %v1681 = vpop.f32.mrf.mxu0
    %v1682 = vadd.f32 0.0, %v1681
    %1683 = vmatmul.f32.gmra.mxu0 %v1650
    %v1684 = vpop.f32.mrf.mxu0
    %v1685 = vadd.f32 0.0, %v1684
    %1686 = vdwg.mxu0
    %v1687 = vmul.f32 %v1670, %v1533
    %v1688 = vmul.f32 %v1673, %v1534
    %v1689 = vmul.f32 %v1676, %v1535
    %v1690 = vmul.f32 %v1679, %v1536
    %v1691 = vmul.f32 %v1682, %v1537
    %v1692 = vmul.f32 %v1685, %v1538
    %v1693 = vadd.f32 %v1687, %v1539
    %v1694 = vadd.f32 %v1688, %v1540
    %v1695 = vadd.f32 %v1689, %v1541
    %v1696 = vadd.f32 %v1690, %v1542
    %v1697 = vadd.f32 %v1691, %v1543
    %v1698 = vadd.f32 %v1692, %v1544
    %vm1699 = vcmp.ge.f32.partialorder %v1693, 0.0
    %vm1700 = vcmp.ge.f32.partialorder %v1694, 0.0
    %vm1701 = vcmp.ge.f32.partialorder %v1695, 0.0
    %vm1702 = vcmp.ge.f32.partialorder %v1696, 0.0
    %vm1703 = vcmp.ge.f32.partialorder %v1697, 0.0
    %vm1704 = vcmp.ge.f32.partialorder %v1698, 0.0
    %v1705 = vmul.f32 %v1693, 0.1
    %v1706 = vmul.f32 %v1694, 0.1
    %v1707 = vmul.f32 %v1695, 0.1
    %v1708 = vmul.f32 %v1696, 0.1
    %v1709 = vmul.f32 %v1697, 0.1
    %v1710 = vmul.f32 %v1698, 0.1
    %v1711 = vsel %vm1699, %v1693, %v1705
    %v1712 = vsel %vm1700, %v1694, %v1706
    %v1713 = vsel %vm1701, %v1695, %v1707
    %v1714 = vsel %vm1702, %v1696, %v1708
    %v1715 = vsel %vm1703, %v1697, %v1709
    %v1716 = vsel %vm1704, %v1698, %v1710
    %v1717 = vld [vmem:[%s13] sm:$0xff]
    %v1718 = vld [vmem:[%s13 + $0x8] sm:$0xff]
    %v1719 = vld [vmem:[%s13 + $0x10] sm:$0xff]
    %v1720 = vld [vmem:[%s13 + $0x18] sm:$0xff]
    %v1721 = vld [vmem:[%s13 + $0x20] sm:$0xff]
    %v1722 = vld [vmem:[%s13 + $0x28] sm:$0xff]
    %v1723 = vld [vmem:[%s13 + $0x30] sm:$0xff]
    %v1724 = vld [vmem:[%s13 + $0x38] sm:$0xff]
    %v1725 = vld [vmem:[%s13 + $0x40] sm:$0xff]
    %v1726 = vld [vmem:[%s13 + $0x48] sm:$0xff]
    %v1727 = vld [vmem:[%s13 + $0x50] sm:$0xff]
    %v1728 = vld [vmem:[%s13 + $0x58] sm:$0xff]
    %v1729 = vld [vmem:[%s13 + $0x60] sm:$0xff]
    %v1730 = vld [vmem:[%s13 + $0x68] sm:$0xff]
    %v1731 = vld [vmem:[%s13 + $0x70] sm:$0xff]
    %v1732 = vld [vmem:[%s13 + $0x78] sm:$0xff]
    %v1733 = vld [vmem:[%s14] sm:$0xff]
    %v1734 = vld [vmem:[%s14 + $0x8] sm:$0xff]
    %v1735 = vld [vmem:[%s15] sm:$0xff]
    %v1736 = vld [vmem:[%s15 + $0x8] sm:$0xff]
    %v1737 = vld [vmem:[%s16] sm:$0xff]
    %v1738 = vld [vmem:[%s16 + $0x8] sm:$0xff]
    %1739 = vmatpush.msra.mxu0 %v1732
    %1740 = vmatpush.msra.mxu0 %v1731
    %1741 = vmatpush.msra.mxu0 %v1730
    %1742 = vmatpush.msra.mxu0 %v1729
    %1743 = vmatpush.msra.mxu0 %v1728
    %1744 = vmatpush.msra.mxu0 %v1727
    %1745 = vmatpush.msra.mxu0 %v1726
    %1746 = vmatpush.msra.mxu0 %v1725
    %1747 = vmatpush.msra.mxu0 %v1724
    %1748 = vmatpush.msra.mxu0 %v1723
    %1749 = vmatpush.msra.mxu0 %v1722
    %1750 = vmatpush.msra.mxu0 %v1721
    %1751 = vmatpush.msra.mxu0 %v1720
    %1752 = vmatpush.msra.mxu0 %v1719
    %1753 = vmatpush.msra.mxu0 %v1718
    %1754 = vmatpush.msra.mxu0 %v1717
    %1755 = vmatmul.f32.gmra.mxu0 %v1711
    %v1756 = vpop.f32.mrf.mxu0
    %v1757 = vadd.f32 0.0, %v1756
    %1758 = vmatmul.f32.gmra.mxu0 %v1712
    %v1759 = vpop.f32.mrf.mxu0
    %v1760 = vadd.f32 0.0, %v1759
    %1761 = vmatmul.f32.gmra.mxu0 %v1713
    %v1762 = vpop.f32.mrf.mxu0
    %v1763 = vadd.f32 0.0, %v1762
    %1764 = vmatmul.f32.gmra.mxu0 %v1714
    %v1765 = vpop.f32.mrf.mxu0
    %v1766 = vadd.f32 0.0, %v1765
    %1767 = vmatmul.f32.gmra.mxu0 %v1715
    %v1768 = vpop.f32.mrf.mxu0
    %v1769 = vadd.f32 0.0, %v1768
    %1770 = vmatmul.f32.gmra.mxu0 %v1716
    %v1771 = vpop.f32.mrf.mxu0
    %v1772 = vadd.f32 0.0, %v1771
    %1773 = vdwg.mxu0
    %vm1774 = vcmask 392192
    %v1776 = vsel %vm1774, %v1733, 0
    %v1779 = vsel %vm1774, %v1734, 0
    %1781 = vmatpush.msra.mxu0 0.0
    %1782 = vmatpush.msra.mxu0 0.0
    %1783 = vmatpush.msra.mxu0 0.0
    %1784 = vmatpush.msra.mxu0 0.0
    %1785 = vmatpush.msra.mxu0 0.0
    %1786 = vmatpush.msra.mxu0 0.0
    %1787 = vmatpush.msra.mxu0 0.0
    %1788 = vmatpush.msra.mxu0 0.0
    %1789 = vmatpush.msra.mxu0 0.0
    %1790 = vmatpush.msra.mxu0 0.0
    %1791 = vmatpush.msra.mxu0 %v1772
    %1792 = vmatpush.msra.mxu0 %v1769
    %1793 = vmatpush.msra.mxu0 %v1766
    %1794 = vmatpush.msra.mxu0 %v1763
    %1795 = vmatpush.msra.mxu0 %v1760
    %1796 = vmatpush.msra.mxu0 %v1757
    %1797 = vmatmul.f32.gmra.mxu0 %v1776
    %v1798 = vpop.f32.mrf.mxu0
    %v1799 = vadd.f32 0.0, %v1798
    %1800 = vmatmul.f32.gmra.mxu0 %v1779
    %v1801 = vpop.f32.mrf.mxu0
    %v1802 = vadd.f32 0.0, %v1801
    %1803 = vdwg.mxu0
    %v1804 = vmul.f32 %v1799, %v1735
    %v1805 = vmul.f32 %v1802, %v1736
    %v1806 = vadd.f32 %v1804, %v1737
    %v1807 = vadd.f32 %v1805, %v1738
    %vm1808 = vcmp.ge.f32.partialorder %v1806, 0.0
    %vm1809 = vcmp.ge.f32.partialorder %v1807, 0.0
    %v1810 = vmul.f32 %v1806, 0.1
    %v1811 = vmul.f32 %v1807, 0.1
    %v1812 = vsel %vm1808, %v1806, %v1810
    %v1813 = vsel %vm1809, %v1807, %v1811
    %v1814 = vld [vmem:[%s17] sm:$0xff]
    %v1815 = vld [vmem:[%s17 + $0x8] sm:$0xff]
    %v1816 = vld [vmem:[%s17 + $0x10] sm:$0xff]
    %v1817 = vld [vmem:[%s17 + $0x18] sm:$0xff]
    %v1818 = vld [vmem:[%s17 + $0x20] sm:$0xff]
    %v1819 = vld [vmem:[%s17 + $0x28] sm:$0xff]
    %v1820 = vld [vmem:[%s17 + $0x30] sm:$0xff]
    %v1821 = vld [vmem:[%s17 + $0x38] sm:$0xff]
    %v1822 = vld [vmem:[%s17 + $0x40] sm:$0xff]
    %v1823 = vld [vmem:[%s17 + $0x48] sm:$0xff]
    %v1824 = vld [vmem:[%s17 + $0x50] sm:$0xff]
    %v1825 = vld [vmem:[%s17 + $0x58] sm:$0xff]
    %v1826 = vld [vmem:[%s17 + $0x60] sm:$0xff]
    %v1827 = vld [vmem:[%s17 + $0x68] sm:$0xff]
    %v1828 = vld [vmem:[%s17 + $0x70] sm:$0xff]
    %v1829 = vld [vmem:[%s17 + $0x78] sm:$0xff]
    %vm1830 = vcmask 523264
    %v1832 = vsel %vm1830, %v1812, 0
    %v1835 = vsel %vm1830, %v1813, 0
    %1837 = vmatpush.msra.mxu0 0.0
    %1838 = vmatpush.msra.mxu0 0.0
    %1839 = vmatpush.msra.mxu0 0.0
    %1840 = vmatpush.msra.mxu0 0.0
    %1841 = vmatpush.msra.mxu0 0.0
    %1842 = vmatpush.msra.mxu0 0.0
    %1843 = vmatpush.msra.mxu0 0.0
    %1844 = vmatpush.msra.mxu0 0.0
    %1845 = vmatpush.msra.mxu0 %v1828
    %1846 = vmatpush.msra.mxu0 %v1826
    %1847 = vmatpush.msra.mxu0 %v1824
    %1848 = vmatpush.msra.mxu0 %v1822
    %1849 = vmatpush.msra.mxu0 %v1820
    %1850 = vmatpush.msra.mxu0 %v1818
    %1851 = vmatpush.msra.mxu0 %v1816
    %1852 = vmatpush.msra.mxu0 %v1814
    %1853 = vmatmul.f32.gmra.mxu0 %v1832
    %v1854 = vpop.f32.mrf.mxu0
    %v1855 = vadd.f32 0.0, %v1854
    %1856 = vmatmul.f32.gmra.mxu0 %v1835
    %v1857 = vpop.f32.mrf.mxu0
    %v1858 = vadd.f32 0.0, %v1857
    %1859 = vdwg.mxu0
    %1860 = vmatpush.msra.mxu0 0.0
    %1861 = vmatpush.msra.mxu0 0.0
    %1862 = vmatpush.msra.mxu0 0.0
    %1863 = vmatpush.msra.mxu0 0.0
    %1864 = vmatpush.msra.mxu0 0.0
    %1865 = vmatpush.msra.mxu0 0.0
    %1866 = vmatpush.msra.mxu0 0.0
    %1867 = vmatpush.msra.mxu0 0.0
    %1868 = vmatpush.msra.mxu0 %v1829
    %1869 = vmatpush.msra.mxu0 %v1827
    %1870 = vmatpush.msra.mxu0 %v1825
    %1871 = vmatpush.msra.mxu0 %v1823
    %1872 = vmatpush.msra.mxu0 %v1821
    %1873 = vmatpush.msra.mxu0 %v1819
    %1874 = vmatpush.msra.mxu0 %v1817
    %1875 = vmatpush.msra.mxu0 %v1815
    %1876 = vmatmul.f32.gmra.mxu0 %v1832
    %v1877 = vpop.f32.mrf.mxu0
    %v1878 = vadd.f32 0.0, %v1877
    %1879 = vmatmul.f32.gmra.mxu0 %v1835
    %v1880 = vpop.f32.mrf.mxu0
    %v1881 = vadd.f32 0.0, %v1880
    %1882 = vdwg.mxu0
    %v1883 = vld [vmem:[%s19] sm:$0x3]
    %v1884 = vld [vmem:[%s18] sm:$0xff]
    %v1885 = vld [vmem:[%s18 + $0x8] sm:$0xff]
    %v1886 = vld [vmem:[%s18 + $0x10] sm:$0xff]
    %v1887 = vld [vmem:[%s18 + $0x18] sm:$0xff]
    %v1888 = vmul.f32 %v1855, %v1884
    %v1889 = vmul.f32 %v1878, %v1885
    %v1890 = vmul.f32 %v1858, %v1886
    %v1891 = vmul.f32 %v1881, %v1887
    %v1893 = vsel %vm134, %v1883, 0
    %1895 = vmatpush.msra.mxu0 0.0
    %1896 = vmatpush.msra.mxu0 0.0
    %1897 = vmatpush.msra.mxu0 0.0
    %1898 = vmatpush.msra.mxu0 0.0
    %1899 = vmatpush.msra.mxu0 0.0
    %1900 = vmatpush.msra.mxu0 0.0
    %1901 = vmatpush.msra.mxu0 0.0
    %1902 = vmatpush.msra.mxu0 0.0
    %1903 = vmatpush.msra.mxu0 0.0
    %1904 = vmatpush.msra.mxu0 0.0
    %1905 = vmatpush.msra.mxu0 0.0
    %1906 = vmatpush.msra.mxu0 0.0
    %1907 = vmatpush.msra.mxu0 0.0
    %1908 = vmatpush.msra.mxu0 0.0
    %1909 = vmatpush.msra.mxu0 %v1890
    %1910 = vmatpush.msra.mxu0 %v1888
    %1911 = vmatmul.f32.gmra.mxu0 %v1893
    %v1912 = vpop.f32.mrf.mxu0
    %v1913 = vadd.f32 0.0, %v1912
    %1914 = vdwg.mxu0
    %1915 = vmatpush.msra.mxu0 0.0
    %1916 = vmatpush.msra.mxu0 0.0
    %1917 = vmatpush.msra.mxu0 0.0
    %1918 = vmatpush.msra.mxu0 0.0
    %1919 = vmatpush.msra.mxu0 0.0
    %1920 = vmatpush.msra.mxu0 0.0
    %1921 = vmatpush.msra.mxu0 0.0
    %1922 = vmatpush.msra.mxu0 0.0
    %1923 = vmatpush.msra.mxu0 0.0
    %1924 = vmatpush.msra.mxu0 0.0
    %1925 = vmatpush.msra.mxu0 0.0
    %1926 = vmatpush.msra.mxu0 0.0
    %1927 = vmatpush.msra.mxu0 0.0
    %1928 = vmatpush.msra.mxu0 0.0
    %1929 = vmatpush.msra.mxu0 %v1891
    %1930 = vmatpush.msra.mxu0 %v1889
    %1931 = vmatmul.f32.gmra.mxu0 %v1893
    %v1932 = vpop.f32.mrf.mxu0
    %v1933 = vadd.f32 0.0, %v1932
    %1934 = vdwg.mxu0
    %v1935 = vld [vmem:[%s20] sm:$0xff]
    %v1936 = vld [vmem:[%s20 + $0x8] sm:$0xff]
    %v1937 = vld [vmem:[%s20 + $0x10] sm:$0xff]
    %v1938 = vld [vmem:[%s20 + $0x18] sm:$0xff]
    %v1939 = vld [vmem:[%s20 + $0x20] sm:$0xff]
    %v1940 = vld [vmem:[%s20 + $0x28] sm:$0xff]
    %v1941 = vld [vmem:[%s20 + $0x30] sm:$0xff]
    %v1942 = vld [vmem:[%s20 + $0x38] sm:$0xff]
    %v1943 = vld [vmem:[%s20 + $0x40] sm:$0xff]
    %v1944 = vld [vmem:[%s20 + $0x48] sm:$0xff]
    %v1945 = vld [vmem:[%s20 + $0x50] sm:$0xff]
    %v1946 = vld [vmem:[%s20 + $0x58] sm:$0xff]
    %v1947 = vld [vmem:[%s20 + $0x60] sm:$0xff]
    %v1948 = vld [vmem:[%s20 + $0x68] sm:$0xff]
    %v1949 = vld [vmem:[%s20 + $0x70] sm:$0xff]
    %v1950 = vld [vmem:[%s20 + $0x78] sm:$0xff]
    %v1951 = vld [vmem:[%s20 + $0x80] sm:$0xff]
    %v1952 = vld [vmem:[%s20 + $0x88] sm:$0xff]
    %v1953 = vld [vmem:[%s20 + $0x90] sm:$0xff]
    %v1954 = vld [vmem:[%s20 + $0x98] sm:$0xff]
    %v1955 = vld [vmem:[%s20 + $0xa0] sm:$0xff]
    %v1956 = vld [vmem:[%s20 + $0xa8] sm:$0xff]
    %v1957 = vld [vmem:[%s20 + $0xb0] sm:$0xff]
    %v1958 = vld [vmem:[%s20 + $0xb8] sm:$0xff]
    %v1959 = vld [vmem:[%s20 + $0xc0] sm:$0xff]
    %v1960 = vld [vmem:[%s20 + $0xc8] sm:$0xff]
    %v1961 = vld [vmem:[%s20 + $0xd0] sm:$0xff]
    %v1962 = vld [vmem:[%s20 + $0xd8] sm:$0xff]
    %v1963 = vld [vmem:[%s20 + $0xe0] sm:$0xff]
    %v1964 = vld [vmem:[%s20 + $0xe8] sm:$0xff]
    %v1965 = vld [vmem:[%s20 + $0xf0] sm:$0xff]
    %v1966 = vld [vmem:[%s20 + $0xf8] sm:$0xff]
    %v1967 = vld [vmem:[%s22] sm:$0x1]
    %v1969 = vperm.slane %v1967, 0
    %1971 = vmatpush.msra.mxu0 %v1950
    %1972 = vmatpush.msra.mxu0 %v1949
    %1973 = vmatpush.msra.mxu0 %v1948
    %1974 = vmatpush.msra.mxu0 %v1947
    %1975 = vmatpush.msra.mxu0 %v1946
    %1976 = vmatpush.msra.mxu0 %v1945
    %1977 = vmatpush.msra.mxu0 %v1944
    %1978 = vmatpush.msra.mxu0 %v1943
    %1979 = vmatpush.msra.mxu0 %v1942
    %1980 = vmatpush.msra.mxu0 %v1941
    %1981 = vmatpush.msra.mxu0 %v1940
    %1982 = vmatpush.msra.mxu0 %v1939
    %1983 = vmatpush.msra.mxu0 %v1938
    %1984 = vmatpush.msra.mxu0 %v1937
    %1985 = vmatpush.msra.mxu0 %v1936
    %1986 = vmatpush.msra.mxu0 %v1935
    %1987 = vmatmul.f32.gmra.mxu0 %v1913
    %v1988 = vpop.f32.mrf.mxu0
    %v1989 = vadd.f32 %v1969, %v1988
    %1990 = vdwg.mxu0
    %1991 = vmatpush.msra.mxu0 %v1966
    %1992 = vmatpush.msra.mxu0 %v1965
    %1993 = vmatpush.msra.mxu0 %v1964
    %1994 = vmatpush.msra.mxu0 %v1963
    %1995 = vmatpush.msra.mxu0 %v1962
    %1996 = vmatpush.msra.mxu0 %v1961
    %1997 = vmatpush.msra.mxu0 %v1960
    %1998 = vmatpush.msra.mxu0 %v1959
    %1999 = vmatpush.msra.mxu0 %v1958
    %2000 = vmatpush.msra.mxu0 %v1957
    %2001 = vmatpush.msra.mxu0 %v1956
    %2002 = vmatpush.msra.mxu0 %v1955
    %2003 = vmatpush.msra.mxu0 %v1954
    %2004 = vmatpush.msra.mxu0 %v1953
    %2005 = vmatpush.msra.mxu0 %v1952
    %2006 = vmatpush.msra.mxu0 %v1951
    %2007 = vmatmul.f32.gmra.mxu0 %v1933
    %v2008 = vpop.f32.mrf.mxu0
    %v2009 = vadd.f32 %v1989, %v2008
    %2010 = vdwg.mxu0
    %v2011 = vld [vmem:[%s21] sm:$0xff]
    %v2012 = vld [vmem:[%s21 + $0x8] sm:$0xff]
    %v2013 = vld [vmem:[%s21 + $0x10] sm:$0xff]
    %v2014 = vld [vmem:[%s21 + $0x18] sm:$0xff]
    %v2015 = vld [vmem:[%s21 + $0x20] sm:$0xff]
    %v2016 = vld [vmem:[%s21 + $0x28] sm:$0xff]
    %v2017 = vld [vmem:[%s21 + $0x30] sm:$0xff]
    %v2018 = vld [vmem:[%s21 + $0x38] sm:$0xff]
    %v2019 = vld [vmem:[%s21 + $0x40] sm:$0xff]
    %v2020 = vld [vmem:[%s21 + $0x48] sm:$0xff]
    %v2021 = vld [vmem:[%s21 + $0x50] sm:$0xff]
    %v2022 = vld [vmem:[%s21 + $0x58] sm:$0xff]
    %v2023 = vld [vmem:[%s21 + $0x60] sm:$0xff]
    %v2024 = vld [vmem:[%s21 + $0x68] sm:$0xff]
    %v2025 = vld [vmem:[%s21 + $0x70] sm:$0xff]
    %v2026 = vld [vmem:[%s21 + $0x78] sm:$0xff]
    %v2027 = vld [vmem:[%s21 + $0x80] sm:$0xff]
    %v2028 = vld [vmem:[%s21 + $0x88] sm:$0xff]
    %v2029 = vld [vmem:[%s21 + $0x90] sm:$0xff]
    %v2030 = vld [vmem:[%s21 + $0x98] sm:$0xff]
    %v2031 = vld [vmem:[%s21 + $0xa0] sm:$0xff]
    %v2032 = vld [vmem:[%s21 + $0xa8] sm:$0xff]
    %v2033 = vld [vmem:[%s21 + $0xb0] sm:$0xff]
    %v2034 = vld [vmem:[%s21 + $0xb8] sm:$0xff]
    %v2035 = vld [vmem:[%s21 + $0xc0] sm:$0xff]
    %v2036 = vld [vmem:[%s21 + $0xc8] sm:$0xff]
    %v2037 = vld [vmem:[%s21 + $0xd0] sm:$0xff]
    %v2038 = vld [vmem:[%s21 + $0xd8] sm:$0xff]
    %v2039 = vld [vmem:[%s21 + $0xe0] sm:$0xff]
    %v2040 = vld [vmem:[%s21 + $0xe8] sm:$0xff]
    %v2041 = vld [vmem:[%s21 + $0xf0] sm:$0xff]
    %v2042 = vld [vmem:[%s21 + $0xf8] sm:$0xff]
    %v2043 = vld [vmem:[%s23] sm:$0x1]
    %v2045 = vperm.slane %v2043, 0
    %2047 = vmatpush.msra.mxu0 %v2026
    %2048 = vmatpush.msra.mxu0 %v2025
    %2049 = vmatpush.msra.mxu0 %v2024
    %2050 = vmatpush.msra.mxu0 %v2023
    %2051 = vmatpush.msra.mxu0 %v2022
    %2052 = vmatpush.msra.mxu0 %v2021
    %2053 = vmatpush.msra.mxu0 %v2020
    %2054 = vmatpush.msra.mxu0 %v2019
    %2055 = vmatpush.msra.mxu0 %v2018
    %2056 = vmatpush.msra.mxu0 %v2017
    %2057 = vmatpush.msra.mxu0 %v2016
    %2058 = vmatpush.msra.mxu0 %v2015
    %2059 = vmatpush.msra.mxu0 %v2014
    %2060 = vmatpush.msra.mxu0 %v2013
    %2061 = vmatpush.msra.mxu0 %v2012
    %2062 = vmatpush.msra.mxu0 %v2011
    %2063 = vmatmul.f32.gmra.mxu0 %v1913
    %v2064 = vpop.f32.mrf.mxu0
    %v2065 = vadd.f32 %v2045, %v2064
    %2066 = vdwg.mxu0
    %2067 = vmatpush.msra.mxu0 %v2042
    %2068 = vmatpush.msra.mxu0 %v2041
    %2069 = vmatpush.msra.mxu0 %v2040
    %2070 = vmatpush.msra.mxu0 %v2039
    %2071 = vmatpush.msra.mxu0 %v2038
    %2072 = vmatpush.msra.mxu0 %v2037
    %2073 = vmatpush.msra.mxu0 %v2036
    %2074 = vmatpush.msra.mxu0 %v2035
    %2075 = vmatpush.msra.mxu0 %v2034
    %2076 = vmatpush.msra.mxu0 %v2033
    %2077 = vmatpush.msra.mxu0 %v2032
    %2078 = vmatpush.msra.mxu0 %v2031
    %2079 = vmatpush.msra.mxu0 %v2030
    %2080 = vmatpush.msra.mxu0 %v2029
    %2081 = vmatpush.msra.mxu0 %v2028
    %2082 = vmatpush.msra.mxu0 %v2027
    %2083 = vmatmul.f32.gmra.mxu0 %v1933
    %v2084 = vpop.f32.mrf.mxu0
    %v2085 = vadd.f32 %v2065, %v2084
    %2086 = vdwg.mxu0
    %v2087 = vmax.f32 %v2085, -5.0
    %v2088 = vmin.f32 %v2087, 5.0
    %v2089 = vmul.f32 %v2088, 0.5
    %v2090 = vmul.f32 %v2089, 1.442695
    %v2091 = vpow.pop %v2090
    %v2092 = vld [vmem:[%s24] sm:$0x3]
    %v2093 = vmul.f32 %v2091, %v2092
    %v2094 = vadd.f32 %v2009, %v2093
    %vm2095 = vcmask 123904
    %2096 = vst.msk [vmem:[#allocation2] sm:$0x3] %vm2095, %v2094
    %v2097 = vmul.f32 %v2088, 1.442695
    %v2098 = vpow.pop %v2097
    %v2099 = vmul.f32 %v2009, %v2009
    %v2100 = vadd.f32 %v2098, %v2099
    %v2101 = vsub.f32 %v2100, 1.0
    %v2102 = vsub.f32 %v2101, %v2088
    %v2103 = vsel %vm2095, %v2102, 0.0
    %2104 = vadd.xlane.f32.xlu0 %v2103
    %v2105 = vpop.xlane.xlu0 %2104
    %vm2106 = vcmask 1041408
    %v2107 = vsel %vm2106, %v2105, 0.0
    %v2108 = vrot.slane %v2107, 4
    %v2109 = vadd.f32 %v2107, %v2108
    %v2110 = vrot.slane %v2109, 2
    %v2111 = vadd.f32 %v2109, %v2110
    %v2112 = vrot.slane %v2111, 1
    %v2113 = vadd.f32 %v2111, %v2112
    %v2114 = vmul.f32 %v2113, 0.25
    %vm2115 = vcmask 0
    %2116 = vst.msk [vmem:[#allocation4] sm:$0x1] %vm2115, %v2114
    // Predicated region
    $region102: #{vgae_encoder_forward.1} parent=1 // pred_check
      _
    $region103: #{vgae_encoder_forward.1} parent=1 // pred_check_branch
      %2118 = sbr.rel (0) target = $region105
    $region104: #{vgae_encoder_forward.1} parent=1 // pred_region
      %2120 = vsyncadd [#allocation3], 0
      %s2122 = sshll.u32 [#allocation2], 4
      %s2123 = int_to_ptr.vmem [resolvable:$true] %s2122
      %s2124 = sshll.u32 %s25, 4
      %s2125 = int_to_ptr.hbm [resolvable:$true] %s2124
      %2127 = dma.vmem_to_hbm [thread:$0]  %s2123, 32, %s2125, [#allocation3]
    $region105: #{vgae_encoder_forward.1} parent=1 // pred_fallthru
      _
    // Predicated region
    $region106: #{vgae_encoder_forward.1} parent=1 // pred_check
      _
    $region107: #{vgae_encoder_forward.1} parent=1 // pred_check_branch
      %2129 = sbr.rel (0) target = $region109
    $region108: #{vgae_encoder_forward.1} parent=1 // pred_region
      %2131 = vsyncadd [#allocation5], 0
      %s2133 = sshll.u32 [#allocation4], 4
      %s2134 = int_to_ptr.vmem [resolvable:$true] %s2133
      %s2135 = sshll.u32 %s26, 4
      %s2136 = int_to_ptr.hbm [resolvable:$true] %s2135
      %2138 = dma.vmem_to_hbm [thread:$0]  %s2134, 16, %s2136, [#allocation5]
    $region109: #{vgae_encoder_forward.1} parent=1 // pred_fallthru
      _
    // Predicated region
    $region110: #{vgae_encoder_forward.1} parent=1 // pred_check
      _
    $region111: #{vgae_encoder_forward.1} parent=1 // pred_check_branch
      %2140 = sbr.rel (0) target = $region113
    $region112: #{vgae_encoder_forward.1} parent=1 // pred_region
      %2142 = dma.done [#allocation3], 32
    $region113: #{vgae_encoder_forward.1} parent=1 // pred_fallthru
      _
    // Predicated region
    $region114: #{vgae_encoder_forward.1} parent=1 // pred_check
      _
    $region115: #{vgae_encoder_forward.1} parent=1 // pred_check_branch
      %2144 = sbr.rel (0) target = $region117
    $region116: #{vgae_encoder_forward.1} parent=1 // pred_region
      %2146 = dma.done [#allocation5], 16
    $region117: #{vgae_encoder_forward.1} parent=1 // pred_fallthru
      _
    %2147 = vsyncpa [#allocation3], 1
    %2148 = vsyncpa [#allocation5], 1

</llo_original>
